<compile_context>
chip_gen: v7x
topology: tpu7x:2x2x1
jax: 0.10.0
libtpu: 0.0.40
codegen_flags: <defaults>
</compile_context>

<pallas_src>
import functools

import numpy as np
import jax
import jax.numpy as jnp
from jax import lax
from jax.experimental import pallas as pl
from jax.experimental.pallas import tpu as pltpu


# ---------------------------------------------------------------------------
# Fused kernel: one (batch, query-tile) grid step per invocation.
# ---------------------------------------------------------------------------
def _fused_attention_kernel(x_ref, w_q_ref, b_q_ref, w_kv_ref, b_kv_ref,
                            w_proj_ref, b_proj_ref, cos_ref, sin_ref,
                            o_ref, k_scratch, v_scratch, *,
                            num_heads, head_dim, q_tile, n_valid):
    hd = head_dim
    n_pad = x_ref.shape[1]
    C = num_heads * hd
    t = pl.program_id(1)

    # ---- once per batch: project K / rh(K) / V for all rows, apply RoPE,
    #      stash head-major bf16 copies in persistent VMEM scratch ---------
    @pl.when(t == 0)
    def _build_kv():
        x_full = x_ref[0]                         # (n_pad, C) bf16
        cos_f = cos_ref[...]                      # (n_pad, hd) f32
        sin_f = sin_ref[...]
        for h in range(num_heads):                # small setup loop; results
            kv = jnp.dot(x_full, w_kv_ref[h],     # stored immediately
                         preferred_element_type=jnp.float32) + b_kv_ref[h]
            k_rope = kv[:, :hd] * cos_f + kv[:, hd:2 * hd] * sin_f
            k_scratch[h] = k_rope.astype(jnp.bfloat16)
            v_scratch[h] = kv[:, 2 * hd:].astype(jnp.bfloat16)

    # ---- per query tile ---------------------------------------------------
    row0 = pl.multiple_of(t * q_tile, q_tile)
    x_tile = x_ref[0, pl.ds(row0, q_tile), :]     # (tq, C) bf16
    cos_t = cos_ref[pl.ds(row0, q_tile), :]       # (tq, hd) f32
    sin_t = sin_ref[pl.ds(row0, q_tile), :]

    # -inf bias for padded key columns; broadcast once, reused per head.
    col = lax.broadcasted_iota(jnp.int32, (1, n_pad), 1)
    bias_row = jnp.where(col < n_valid, jnp.float32(0.0), jnp.float32(-1e30))
    key_bias = jnp.broadcast_to(bias_row, (q_tile, n_pad))

    def head_body(h, acc):
        # Q projection (+ rotate-half columns); softmax scale pre-folded.
        qq = jnp.dot(x_tile, w_q_ref[h],
                     preferred_element_type=jnp.float32) + b_q_ref[h]
        q_rope = (qq[:, :hd] * cos_t + qq[:, hd:] * sin_t).astype(jnp.bfloat16)

        k_h = k_scratch[h]                        # (n_pad, hd) bf16
        v_h = v_scratch[h]

        s = lax.dot_general(q_rope, k_h, (((1,), (1,)), ((), ())),
                            preferred_element_type=jnp.float32)  # (tq, n_pad)
        s = s + key_bias

        m = jnp.max(s, axis=-1, keepdims=True)
        p = jnp.exp(s - m)
        denom = jnp.sum(p, axis=-1, keepdims=True)

        pv = jnp.dot(p.astype(jnp.bfloat16), v_h,
                     preferred_element_type=jnp.float32)          # (tq, hd)
        out_h = pv * pl.reciprocal(denom, approx=True)            # deferred norm

        # Fold this head's slice of the output projection directly
        # (no lane-dim concatenate of head outputs).
        return acc + jnp.dot(out_h.astype(jnp.bfloat16), w_proj_ref[h],
                             preferred_element_type=jnp.float32)  # (tq, C)

    acc = lax.fori_loop(0, num_heads, head_body,
                        jnp.zeros((q_tile, C), jnp.float32))
    o_ref[0] = acc + b_proj_ref[...]


# ---------------------------------------------------------------------------
# Wrapper: pad N, single fused pallas_call over (batch, query-tile) grid.
# ---------------------------------------------------------------------------
def attention_forward(x, params, *, num_heads, q_tile=128):
    B, N, C = x.shape
    hd = C // num_heads
    n_pad = ((N + 127) // 128) * 128
    q_tile = min(q_tile, n_pad)
    n_tiles = n_pad // q_tile

    x_p = jnp.pad(x, ((0, 0), (0, n_pad - N), (0, 0))).astype(jnp.bfloat16)

    kern = functools.partial(_fused_attention_kernel, num_heads=num_heads,
                             head_dim=hd, q_tile=q_tile, n_valid=N)

    def full_spec(arr):
        ndim = arr.ndim
        return pl.BlockSpec(arr.shape, lambda b, t, _n=ndim: (0,) * _n)

    out = pl.pallas_call(
        kern,
        out_shape=jax.ShapeDtypeStruct((B, n_pad, C), jnp.float32),
        grid=(B, n_tiles),
        in_specs=[
            pl.BlockSpec((1, n_pad, C), lambda b, t: (b, 0, 0)),
            full_spec(params["w_q"]),
            full_spec(params["b_q"]),
            full_spec(params["w_kv"]),
            full_spec(params["b_kv"]),
            full_spec(params["w_proj"]),
            full_spec(params["b_proj"]),
            full_spec(params["cos"]),
            full_spec(params["sin"]),
        ],
        out_specs=pl.BlockSpec((1, q_tile, C), lambda b, t: (b, t, 0)),
        scratch_shapes=[
            pltpu.VMEM((num_heads, n_pad, hd), jnp.bfloat16),   # K (rope'd)
            pltpu.VMEM((num_heads, n_pad, hd), jnp.bfloat16),   # V
        ],
        compiler_params=pltpu.CompilerParams(
            dimension_semantics=("parallel", "arbitrary"),
            vmem_limit_bytes=32 * 1024 * 1024),
    )(x_p, params["w_q"], params["b_q"], params["w_kv"], params["b_kv"],
      params["w_proj"], params["b_proj"], params["cos"], params["sin"])
    return out[:, :N, :]


# ---------------------------------------------------------------------------
# Host-side parameter preparation: head-major weights, rotate_half folded
# into projection columns (W, W@R), softmax scale folded into Q weights.
# ---------------------------------------------------------------------------
def prepare_params(w_qkv, b_qkv, w_proj, b_proj, *, num_heads, num_extra_tokens,
                   n_pad, image_size=224, patch_size=16, theta=10000.0):
    w_qkv = np.asarray(w_qkv, np.float32)
    b_qkv = np.asarray(b_qkv, np.float32)
    w_proj = np.asarray(w_proj, np.float32)
    b_proj = np.asarray(b_proj, np.float32)

    C = w_qkv.shape[0]
    H = num_heads
    hd = C // H
    scale = float(hd) ** (-0.5)

    W_q, W_k, W_v = w_qkv[:, :C], w_qkv[:, C:2 * C], w_qkv[:, 2 * C:]
    b_q, b_k, b_v = b_qkv[:C], b_qkv[C:2 * C], b_qkv[2 * C:]

    # Interleaved rotate_half as a +/-1 permutation matrix (exact).
    R = np.zeros((hd, hd), np.float32)
    for i in range(hd // 2):
        R[2 * i + 1, 2 * i] = -1.0
        R[2 * i, 2 * i + 1] = 1.0

    w_q_h = np.zeros((H, C, 2 * hd), np.float32)
    b_q_h = np.zeros((H, 1, 2 * hd), np.float32)
    w_kv_h = np.zeros((H, C, 3 * hd), np.float32)
    b_kv_h = np.zeros((H, 1, 3 * hd), np.float32)
    w_pr_h = np.zeros((H, hd, C), np.float32)
    for h in range(H):
        sl = slice(h * hd, (h + 1) * hd)
        Wqh, Wkh, Wvh = W_q[:, sl], W_k[:, sl], W_v[:, sl]
        bqh, bkh, bvh = b_q[sl], b_k[sl], b_v[sl]
        w_q_h[h] = np.concatenate([Wqh, Wqh @ R], axis=1) * scale
        b_q_h[h, 0] = np.concatenate([bqh, bqh @ R]) * scale
        w_kv_h[h] = np.concatenate([Wkh, Wkh @ R, Wvh], axis=1)
        b_kv_h[h, 0] = np.concatenate([bkh, bkh @ R, bvh])
        w_pr_h[h] = w_proj[sl, :]

    # VisionRotaryEmbedding tables (torch repeat(1, 2) == tile along last dim).
    rope_len = (image_size // patch_size) ** 2               # 196
    exps = np.arange(0, hd, 2, dtype=np.float32) / (-hd)
    freqs = np.power(np.float32(theta), exps)
    f = np.einsum("i,j->ij", np.arange(rope_len, dtype=np.float32), freqs)
    f = np.tile(f, (1, 2))                                    # (rope_len, hd)

    cos = np.ones((n_pad, hd), np.float32)                    # identity rows for
    sin = np.zeros((n_pad, hd), np.float32)                   # extra/padded tokens
    cos[num_extra_tokens:num_extra_tokens + rope_len] = np.cos(f)
    sin[num_extra_tokens:num_extra_tokens + rope_len] = np.sin(f)

    return dict(
        w_q=jnp.asarray(w_q_h, jnp.bfloat16),
        b_q=jnp.asarray(b_q_h, jnp.float32),
        w_kv=jnp.asarray(w_kv_h, jnp.bfloat16),
        b_kv=jnp.asarray(b_kv_h, jnp.float32),
        w_proj=jnp.asarray(w_pr_h, jnp.bfloat16),
        b_proj=jnp.asarray(b_proj[None, :], jnp.float32),
        cos=jnp.asarray(cos, jnp.float32),
        sin=jnp.asarray(sin, jnp.float32),
    )


# ---------------------------------------------------------------------------
# Plain-JAX f32 reference (mirrors the PyTorch module exactly, eval mode)
# ---------------------------------------------------------------------------
def reference_forward(x, w_qkv, b_qkv, w_proj, b_proj, *, num_heads,
                      num_extra_tokens, image_size=224, patch_size=16,
                      theta=10000.0):
    B, N, C = x.shape
    hd = C // num_heads
    scale = float(hd) ** (-0.5)

    qkv = x @ w_qkv + b_qkv
    qkv = qkv.reshape(B, N, 3, num_heads, hd).transpose(2, 0, 3, 1, 4)
    q, k, v = qkv[0], qkv[1], qkv[2]

    rope_len = (image_size // patch_size) ** 2
    exps = jnp.arange(0, hd, 2, dtype=jnp.float32) / (-hd)
    freqs = jnp.float32(theta) ** exps
    f = jnp.einsum("i,j->ij", jnp.arange(rope_len, dtype=jnp.float32), freqs)
    f = jnp.tile(f, (1, 2))
    cos, sin = jnp.cos(f), jnp.sin(f)

    def rotate_half(t):
        t2 = t.reshape(*t.shape[:-1], hd // 2, 2)
        t1, tb = t2[..., 0], t2[..., 1]
        return jnp.stack([-tb, t1], axis=-1).reshape(*t.shape)

    def rope(t):
        return t * cos + rotate_half(t) * sin

    q = jnp.concatenate(
        [q[:, :, :num_extra_tokens], rope(q[:, :, num_extra_tokens:])], axis=2)
    k = jnp.concatenate(
        [k[:, :, :num_extra_tokens], rope(k[:, :, num_extra_tokens:])], axis=2)

    attn = jnp.einsum("bhqd,bhkd->bhqk", q, k) * scale
    attn = jax.nn.softmax(attn, axis=-1)
    out = jnp.einsum("bhqk,bhkd->bhqd", attn, v)
    out = out.transpose(0, 2, 1, 3).reshape(B, N, C)
    return out @ w_proj + b_proj


# ---------------------------------------------------------------------------
# Main
# ---------------------------------------------------------------------------
if __name__ == "__main__":
    # Small config; N is fixed by VisionRotaryEmbedding (image 224 / patch 16).
    dim = 32
    num_heads = 2
    num_extra_tokens = 1
    B = 2
    N = num_extra_tokens + (224 // 16) ** 2   # 197

    key = jax.random.PRNGKey(0)
    kx, k1, k2, k3, k4 = jax.random.split(key, 5)

    # nn.Linear-style uniform init (JAX convention: y = x @ W + b).
    bound = 1.0 / np.sqrt(dim)
    w_qkv = jax.random.uniform(k1, (dim, 3 * dim), jnp.float32, -bound, bound)
    b_qkv = jax.random.uniform(k2, (3 * dim,), jnp.float32, -bound, bound)
    w_proj = jax.random.uniform(k3, (dim, dim), jnp.float32, -bound, bound)
    b_proj = jax.random.uniform(k4, (dim,), jnp.float32, -bound, bound)

    x = jax.random.normal(kx, (B, N, dim), jnp.float32)

    n_pad = ((N + 127) // 128) * 128          # 256: clean (8,128) tiles
    params = prepare_params(w_qkv, b_qkv, w_proj, b_proj,
                            num_heads=num_heads,
                            num_extra_tokens=num_extra_tokens,
                            n_pad=n_pad)

    fwd = jax.jit(functools.partial(attention_forward, num_heads=num_heads))
    y = fwd(x, params)
    jax.block_until_ready(y)
    assert y.shape == (B, N, dim), y.shape

    # Numerics check vs the f32 reference (bf16 MXU inputs + approx reciprocal,
    # so allow a loose-but-meaningful tolerance).
    y_ref = reference_forward(x, w_qkv, b_qkv, w_proj, b_proj,
                              num_heads=num_heads,
                              num_extra_tokens=num_extra_tokens)
    err = float(jnp.max(jnp.abs(y - y_ref)))
    assert err < 7e-2, f"max abs error too large: {err}"

    print("KERNEL_OK")
</pallas_src>

<mosaic_0001>
module attributes {stable_mosaic.version = 11 : i64} {
  func.func @_fused_attention_kernel(%arg0: i32, %arg1: i32, %arg2: memref<1x256x32xbf16, #tpu.memory_space<vmem>>, %arg3: memref<2x32x32xbf16, #tpu.memory_space<vmem>>, %arg4: memref<2x1x32xf32, #tpu.memory_space<vmem>>, %arg5: memref<2x32x48xbf16, #tpu.memory_space<vmem>>, %arg6: memref<2x1x48xf32, #tpu.memory_space<vmem>>, %arg7: memref<2x16x32xbf16, #tpu.memory_space<vmem>>, %arg8: memref<1x32xf32, #tpu.memory_space<vmem>>, %arg9: memref<256x16xf32, #tpu.memory_space<vmem>>, %arg10: memref<256x16xf32, #tpu.memory_space<vmem>>, %arg11: memref<1x128x32xf32, #tpu.memory_space<vmem>>, %arg12: memref<2x256x16xbf16, #tpu.memory_space<vmem>>, %arg13: memref<2x256x16xbf16, #tpu.memory_space<vmem>>) attributes {dimension_semantics = [#tpu.dimension_semantics<parallel>, #tpu.dimension_semantics<arbitrary>], iteration_bounds = array<i64: 2, 2>, scalar_prefetch = 0 : i64, scratch_operands = 2 : i64, tpu.core_type = #tpu.core_type<tc>, window_params = [{transform_indices = @transform_0, window_bounds = array<i64: 1, 256, 32>}, {pipeline_mode = #tpu.pipeline_mode<synchronous>, transform_indices = @transform_1, window_bounds = array<i64: 2, 32, 32>}, {pipeline_mode = #tpu.pipeline_mode<synchronous>, transform_indices = @transform_2, window_bounds = array<i64: 2, 1, 32>}, {pipeline_mode = #tpu.pipeline_mode<synchronous>, transform_indices = @transform_3, window_bounds = array<i64: 2, 32, 48>}, {pipeline_mode = #tpu.pipeline_mode<synchronous>, transform_indices = @transform_4, window_bounds = array<i64: 2, 1, 48>}, {pipeline_mode = #tpu.pipeline_mode<synchronous>, transform_indices = @transform_5, window_bounds = array<i64: 2, 16, 32>}, {pipeline_mode = #tpu.pipeline_mode<synchronous>, transform_indices = @transform_6, window_bounds = array<i64: 1, 32>}, {pipeline_mode = #tpu.pipeline_mode<synchronous>, transform_indices = @transform_7, window_bounds = array<i64: 256, 16>}, {pipeline_mode = #tpu.pipeline_mode<synchronous>, transform_indices = @transform_8, window_bounds = array<i64: 256, 16>}, {transform_indices = @transform_9, window_bounds = array<i64: 1, 128, 32>}]} {
    %c0_i32 = arith.constant 0 : i32
    %0 = arith.cmpi eq, %arg1, %c0_i32 : i32
    %1 = arith.extui %0 : i1 to i32
    %c0_i32_0 = arith.constant 0 : i32
    %2 = arith.cmpi ne, %1, %c0_i32_0 : i32
    scf.if %2 {
      %c0_13 = arith.constant 0 : index
      %c0_14 = arith.constant 0 : index
      %c0_15 = arith.constant 0 : index
      %29 = vector.load %arg2[%c0_13, %c0_14, %c0_15] : memref<1x256x32xbf16, #tpu.memory_space<vmem>>, vector<1x256x32xbf16>
      %30 = vector.shape_cast %29 : vector<1x256x32xbf16> to vector<256x32xbf16>
      %c0_16 = arith.constant 0 : index
      %c0_17 = arith.constant 0 : index
      %31 = vector.load %arg9[%c0_16, %c0_17] : memref<256x16xf32, #tpu.memory_space<vmem>>, vector<256x16xf32>
      %c0_18 = arith.constant 0 : index
      %c0_19 = arith.constant 0 : index
      %32 = vector.load %arg10[%c0_18, %c0_19] : memref<256x16xf32, #tpu.memory_space<vmem>>, vector<256x16xf32>
      %c0_20 = arith.constant 0 : index
      %c0_21 = arith.constant 0 : index
      %c0_22 = arith.constant 0 : index
      %33 = vector.load %arg5[%c0_20, %c0_21, %c0_22] : memref<2x32x48xbf16, #tpu.memory_space<vmem>>, vector<1x32x48xbf16>
      %34 = vector.shape_cast %33 : vector<1x32x48xbf16> to vector<32x48xbf16>
      %cst_23 = arith.constant dense<0.000000e+00> : vector<256x48xf32>
      %35 = tpu.matmul %30, %34, %cst_23 {dimension_numbers = #tpu.dot_dimension_numbers<[1], [0], [0], [1], [0, 0, 1, 1], [], []>} : vector<256x32xbf16>, vector<32x48xbf16>, vector<256x48xf32> -> vector<256x48xf32>
      %c0_24 = arith.constant 0 : index
      %c0_25 = arith.constant 0 : index
      %c0_26 = arith.constant 0 : index
      %36 = vector.load %arg6[%c0_24, %c0_25, %c0_26] : memref<2x1x48xf32, #tpu.memory_space<vmem>>, vector<1x1x48xf32>
      %37 = vector.shape_cast %36 : vector<1x1x48xf32> to vector<1x48xf32>
      %38 = vector.broadcast %37 : vector<1x48xf32> to vector<256x48xf32>
      %39 = arith.addf %35, %38 : vector<256x48xf32>
      %40 = vector.extract_strided_slice %39 {offsets = [0, 0], sizes = [256, 16], strides = [1, 1]} : vector<256x48xf32> to vector<256x16xf32>
      %41 = arith.mulf %40, %31 : vector<256x16xf32>
      %42 = vector.extract_strided_slice %39 {offsets = [0, 16], sizes = [256, 16], strides = [1, 1]} : vector<256x48xf32> to vector<256x16xf32>
      %43 = arith.mulf %42, %32 : vector<256x16xf32>
      %44 = arith.addf %41, %43 : vector<256x16xf32>
      %45 = arith.truncf %44 : vector<256x16xf32> to vector<256x16xbf16>
      %c0_27 = arith.constant 0 : index
      %c0_28 = arith.constant 0 : index
      %c0_29 = arith.constant 0 : index
      %46 = vector.load %arg12[%c0_27, %c0_28, %c0_29] : memref<2x256x16xbf16, #tpu.memory_space<vmem>>, vector<1x256x16xbf16>
      %47 = vector.shape_cast %46 : vector<1x256x16xbf16> to vector<256x16xbf16>
      %48 = vector.shape_cast %45 : vector<256x16xbf16> to vector<1x256x16xbf16>
      tpu.vector_store %arg12[%c0_27, %c0_28, %c0_29], %48 {strides = array<i32>} : memref<2x256x16xbf16, #tpu.memory_space<vmem>>, vector<1x256x16xbf16>,
      %49 = vector.extract_strided_slice %39 {offsets = [0, 32], sizes = [256, 16], strides = [1, 1]} : vector<256x48xf32> to vector<256x16xf32>
      %50 = arith.truncf %49 : vector<256x16xf32> to vector<256x16xbf16>
      %c0_30 = arith.constant 0 : index
      %c0_31 = arith.constant 0 : index
      %c0_32 = arith.constant 0 : index
      %51 = vector.load %arg13[%c0_30, %c0_31, %c0_32] : memref<2x256x16xbf16, #tpu.memory_space<vmem>>, vector<1x256x16xbf16>
      %52 = vector.shape_cast %51 : vector<1x256x16xbf16> to vector<256x16xbf16>
      %53 = vector.shape_cast %50 : vector<256x16xbf16> to vector<1x256x16xbf16>
      tpu.vector_store %arg13[%c0_30, %c0_31, %c0_32], %53 {strides = array<i32>} : memref<2x256x16xbf16, #tpu.memory_space<vmem>>, vector<1x256x16xbf16>,
      %c1 = arith.constant 1 : index
      %c0_33 = arith.constant 0 : index
      %c0_34 = arith.constant 0 : index
      %54 = vector.load %arg5[%c1, %c0_33, %c0_34] : memref<2x32x48xbf16, #tpu.memory_space<vmem>>, vector<1x32x48xbf16>
      %55 = vector.shape_cast %54 : vector<1x32x48xbf16> to vector<32x48xbf16>
      %cst_35 = arith.constant dense<0.000000e+00> : vector<256x48xf32>
      %56 = tpu.matmul %30, %55, %cst_35 {dimension_numbers = #tpu.dot_dimension_numbers<[1], [0], [0], [1], [0, 0, 1, 1], [], []>} : vector<256x32xbf16>, vector<32x48xbf16>, vector<256x48xf32> -> vector<256x48xf32>
      %c1_36 = arith.constant 1 : index
      %c0_37 = arith.constant 0 : index
      %c0_38 = arith.constant 0 : index
      %57 = vector.load %arg6[%c1_36, %c0_37, %c0_38] : memref<2x1x48xf32, #tpu.memory_space<vmem>>, vector<1x1x48xf32>
      %58 = vector.shape_cast %57 : vector<1x1x48xf32> to vector<1x48xf32>
      %59 = vector.broadcast %58 : vector<1x48xf32> to vector<256x48xf32>
      %60 = arith.addf %56, %59 : vector<256x48xf32>
      %61 = vector.extract_strided_slice %60 {offsets = [0, 0], sizes = [256, 16], strides = [1, 1]} : vector<256x48xf32> to vector<256x16xf32>
      %62 = arith.mulf %61, %31 : vector<256x16xf32>
      %63 = vector.extract_strided_slice %60 {offsets = [0, 16], sizes = [256, 16], strides = [1, 1]} : vector<256x48xf32> to vector<256x16xf32>
      %64 = arith.mulf %63, %32 : vector<256x16xf32>
      %65 = arith.addf %62, %64 : vector<256x16xf32>
      %66 = arith.truncf %65 : vector<256x16xf32> to vector<256x16xbf16>
      %c1_39 = arith.constant 1 : index
      %c0_40 = arith.constant 0 : index
      %c0_41 = arith.constant 0 : index
      %67 = vector.load %arg12[%c1_39, %c0_40, %c0_41] : memref<2x256x16xbf16, #tpu.memory_space<vmem>>, vector<1x256x16xbf16>
      %68 = vector.shape_cast %67 : vector<1x256x16xbf16> to vector<256x16xbf16>
      %69 = vector.shape_cast %66 : vector<256x16xbf16> to vector<1x256x16xbf16>
      tpu.vector_store %arg12[%c1_39, %c0_40, %c0_41], %69 {strides = array<i32>} : memref<2x256x16xbf16, #tpu.memory_space<vmem>>, vector<1x256x16xbf16>,
      %70 = vector.extract_strided_slice %60 {offsets = [0, 32], sizes = [256, 16], strides = [1, 1]} : vector<256x48xf32> to vector<256x16xf32>
      %71 = arith.truncf %70 : vector<256x16xf32> to vector<256x16xbf16>
      %c1_42 = arith.constant 1 : index
      %c0_43 = arith.constant 0 : index
      %c0_44 = arith.constant 0 : index
      %72 = vector.load %arg13[%c1_42, %c0_43, %c0_44] : memref<2x256x16xbf16, #tpu.memory_space<vmem>>, vector<1x256x16xbf16>
      %73 = vector.shape_cast %72 : vector<1x256x16xbf16> to vector<256x16xbf16>
      %74 = vector.shape_cast %71 : vector<256x16xbf16> to vector<1x256x16xbf16>
      tpu.vector_store %arg13[%c1_42, %c0_43, %c0_44], %74 {strides = array<i32>} : memref<2x256x16xbf16, #tpu.memory_space<vmem>>, vector<1x256x16xbf16>,
    } else {
    }
    %c128_i32 = arith.constant 128 : i32
    %3 = arith.muli %arg1, %c128_i32 : i32
    %4 = tpu.assume_multiple %3, 128 : i32
    %c0 = arith.constant 0 : index
    %5 = arith.index_cast %4 : i32 to index
    %c0_1 = arith.constant 0 : index
    %6 = vector.load %arg2[%c0, %5, %c0_1] : memref<1x256x32xbf16, #tpu.memory_space<vmem>>, vector<1x128x32xbf16>
    %7 = vector.shape_cast %6 : vector<1x128x32xbf16> to vector<128x32xbf16>
    %8 = arith.index_cast %4 : i32 to index
    %c0_2 = arith.constant 0 : index
    %9 = vector.load %arg9[%8, %c0_2] : memref<256x16xf32, #tpu.memory_space<vmem>>, vector<128x16xf32>
    %10 = arith.index_cast %4 : i32 to index
    %c0_3 = arith.constant 0 : index
    %11 = vector.load %arg10[%10, %c0_3] : memref<256x16xf32, #tpu.memory_space<vmem>>, vector<128x16xf32>
    %12 = tpu.iota {dimensions = array<i32: 1>} : vector<1x256xi32>
    %c197_i32 = arith.constant 197 : i32
    %13 = vector.broadcast %c197_i32 : i32 to vector<1x256xi32>
    %14 = arith.cmpi slt, %12, %13 : vector<1x256xi32>
    %cst = arith.constant 0.000000e+00 : f32
    %cst_4 = arith.constant -1.000000e+30 : f32
    %15 = vector.broadcast %cst : f32 to vector<1x256xf32>
    %16 = vector.broadcast %cst_4 : f32 to vector<1x256xf32>
    %17 = arith.select %14, %15, %16 : vector<1x256xi1>, vector<1x256xf32>
    %18 = vector.shape_cast %17 : vector<1x256xf32> to vector<1x256xf32>
    %19 = vector.broadcast %18 : vector<1x256xf32> to vector<128x256xf32>
    %cst_5 = arith.constant 0.000000e+00 : f32
    %20 = vector.broadcast %cst_5 : f32 to vector<128x32xf32>
    %c0_i32_6 = arith.constant 0 : i32
    %c2_i32 = arith.constant 2 : i32
    %21 = arith.addi %c0_i32_6, %c2_i32 : i32
    %c1_i32 = arith.constant 1 : i32
    %22 = scf.for %arg14 = %c0_i32_6 to %21 step %c1_i32 iter_args(%arg15 = %20) -> (vector<128x32xf32>)  : i32 {
      %29 = arith.index_cast %arg14 : i32 to index
      %c0_13 = arith.constant 0 : index
      %c0_14 = arith.constant 0 : index
      %30 = vector.load %arg3[%29, %c0_13, %c0_14] : memref<2x32x32xbf16, #tpu.memory_space<vmem>>, vector<1x32x32xbf16>
      %31 = vector.shape_cast %30 : vector<1x32x32xbf16> to vector<32x32xbf16>
      %cst_15 = arith.constant dense<0.000000e+00> : vector<128x32xf32>
      %32 = tpu.matmul %7, %31, %cst_15 {dimension_numbers = #tpu.dot_dimension_numbers<[1], [0], [0], [1], [0, 0, 1, 1], [], []>} : vector<128x32xbf16>, vector<32x32xbf16>, vector<128x32xf32> -> vector<128x32xf32>
      %33 = arith.index_cast %arg14 : i32 to index
      %c0_16 = arith.constant 0 : index
      %c0_17 = arith.constant 0 : index
      %34 = vector.load %arg4[%33, %c0_16, %c0_17] : memref<2x1x32xf32, #tpu.memory_space<vmem>>, vector<1x1x32xf32>
      %35 = vector.shape_cast %34 : vector<1x1x32xf32> to vector<1x32xf32>
      %36 = vector.broadcast %35 : vector<1x32xf32> to vector<128x32xf32>
      %37 = arith.addf %32, %36 : vector<128x32xf32>
      %38 = vector.extract_strided_slice %37 {offsets = [0, 0], sizes = [128, 16], strides = [1, 1]} : vector<128x32xf32> to vector<128x16xf32>
      %39 = arith.mulf %38, %9 : vector<128x16xf32>
      %40 = vector.extract_strided_slice %37 {offsets = [0, 16], sizes = [128, 16], strides = [1, 1]} : vector<128x32xf32> to vector<128x16xf32>
      %41 = arith.mulf %40, %11 : vector<128x16xf32>
      %42 = arith.addf %39, %41 : vector<128x16xf32>
      %43 = arith.truncf %42 : vector<128x16xf32> to vector<128x16xbf16>
      %44 = arith.index_cast %arg14 : i32 to index
      %c0_18 = arith.constant 0 : index
      %c0_19 = arith.constant 0 : index
      %45 = vector.load %arg12[%44, %c0_18, %c0_19] : memref<2x256x16xbf16, #tpu.memory_space<vmem>>, vector<1x256x16xbf16>
      %46 = vector.shape_cast %45 : vector<1x256x16xbf16> to vector<256x16xbf16>
      %47 = arith.index_cast %arg14 : i32 to index
      %c0_20 = arith.constant 0 : index
      %c0_21 = arith.constant 0 : index
      %48 = vector.load %arg13[%47, %c0_20, %c0_21] : memref<2x256x16xbf16, #tpu.memory_space<vmem>>, vector<1x256x16xbf16>
      %49 = vector.shape_cast %48 : vector<1x256x16xbf16> to vector<256x16xbf16>
      %cst_22 = arith.constant dense<0.000000e+00> : vector<128x256xf32>
      %50 = tpu.matmul %43, %46, %cst_22 {dimension_numbers = #tpu.dot_dimension_numbers<[1], [1], [0], [0], [0, 0, 1, 0], [], []>} : vector<128x16xbf16>, vector<256x16xbf16>, vector<128x256xf32> -> vector<128x256xf32>
      %51 = arith.addf %50, %19 : vector<128x256xf32>
      %cst_23 = arith.constant dense<0xFF800000> : vector<128xf32>
      %52 = vector.multi_reduction <maximumf>, %51, %cst_23 [1] : vector<128x256xf32> to vector<128xf32>
      %53 = vector.shape_cast %52 : vector<128xf32> to vector<128x1xf32>
      %54 = vector.broadcast %53 : vector<128x1xf32> to vector<128x256xf32>
      %55 = arith.subf %51, %54 : vector<128x256xf32>
      %56 = math.exp %55 : vector<128x256xf32>
      %cst_24 = arith.constant dense<0.000000e+00> : vector<128xf32>
      %57 = vector.multi_reduction <add>, %56, %cst_24 [1] : vector<128x256xf32> to vector<128xf32>
      %58 = vector.shape_cast %57 : vector<128xf32> to vector<128x1xf32>
      %59 = arith.truncf %56 : vector<128x256xf32> to vector<128x256xbf16>
      %cst_25 = arith.constant dense<0.000000e+00> : vector<128x16xf32>
      %60 = tpu.matmul %59, %49, %cst_25 {dimension_numbers = #tpu.dot_dimension_numbers<[1], [0], [0], [1], [0, 0, 1, 1], [], []>} : vector<128x256xbf16>, vector<256x16xbf16>, vector<128x16xf32> -> vector<128x16xf32>
      %61 = tpu.reciprocal %58 {approx = true} : vector<128x1xf32> -> vector<128x1xf32>
      %62 = vector.broadcast %61 : vector<128x1xf32> to vector<128x16xf32>
      %63 = arith.mulf %60, %62 : vector<128x16xf32>
      %64 = arith.truncf %63 : vector<128x16xf32> to vector<128x16xbf16>
      %65 = arith.index_cast %arg14 : i32 to index
      %c0_26 = arith.constant 0 : index
      %c0_27 = arith.constant 0 : index
      %66 = vector.load %arg7[%65, %c0_26, %c0_27] : memref<2x16x32xbf16, #tpu.memory_space<vmem>>, vector<1x16x32xbf16>
      %67 = vector.shape_cast %66 : vector<1x16x32xbf16> to vector<16x32xbf16>
      %cst_28 = arith.constant dense<0.000000e+00> : vector<128x32xf32>
      %68 = tpu.matmul %64, %67, %cst_28 {dimension_numbers = #tpu.dot_dimension_numbers<[1], [0], [0], [1], [0, 0, 1, 1], [], []>} : vector<128x16xbf16>, vector<16x32xbf16>, vector<128x32xf32> -> vector<128x32xf32>
      %69 = arith.addf %arg15, %68 : vector<128x32xf32>
      scf.yield %69 : vector<128x32xf32>
    }
    %c2_i32_7 = arith.constant 2 : i32
    %c0_8 = arith.constant 0 : index
    %c0_9 = arith.constant 0 : index
    %23 = vector.load %arg8[%c0_8, %c0_9] : memref<1x32xf32, #tpu.memory_space<vmem>>, vector<1x32xf32>
    %24 = vector.broadcast %23 : vector<1x32xf32> to vector<128x32xf32>
    %25 = arith.addf %22, %24 : vector<128x32xf32>
    %c0_10 = arith.constant 0 : index
    %c0_11 = arith.constant 0 : index
    %c0_12 = arith.constant 0 : index
    %26 = vector.load %arg11[%c0_10, %c0_11, %c0_12] : memref<1x128x32xf32, #tpu.memory_space<vmem>>, vector<1x128x32xf32>
    %27 = vector.shape_cast %26 : vector<1x128x32xf32> to vector<128x32xf32>
    %28 = vector.shape_cast %25 : vector<128x32xf32> to vector<1x128x32xf32>
    tpu.vector_store %arg11[%c0_10, %c0_11, %c0_12], %28 {strides = array<i32>} : memref<1x128x32xf32, #tpu.memory_space<vmem>>, vector<1x128x32xf32>,
    return
  }
  func.func @transform_0(%arg0: i32, %arg1: i32) -> (i32, i32, i32) {
    %c0_i32 = arith.constant 0 : i32
    %c0_i32_0 = arith.constant 0 : i32
    %c0_i32_1 = arith.constant 0 : i32
    return %arg0, %c0_i32, %c0_i32_0 : i32, i32, i32
  }
  func.func @transform_1(%arg0: i32, %arg1: i32) -> (i32, i32, i32) {
    %c0_i32 = arith.constant 0 : i32
    %c0_i32_0 = arith.constant 0 : i32
    %c0_i32_1 = arith.constant 0 : i32
    %c0_i32_2 = arith.constant 0 : i32
    return %c0_i32, %c0_i32_0, %c0_i32_1 : i32, i32, i32
  }
  func.func @transform_2(%arg0: i32, %arg1: i32) -> (i32, i32, i32) {
    %c0_i32 = arith.constant 0 : i32
    %c0_i32_0 = arith.constant 0 : i32
    %c0_i32_1 = arith.constant 0 : i32
    %c0_i32_2 = arith.constant 0 : i32
    return %c0_i32, %c0_i32_0, %c0_i32_1 : i32, i32, i32
  }
  func.func @transform_3(%arg0: i32, %arg1: i32) -> (i32, i32, i32) {
    %c0_i32 = arith.constant 0 : i32
    %c0_i32_0 = arith.constant 0 : i32
    %c0_i32_1 = arith.constant 0 : i32
    %c0_i32_2 = arith.constant 0 : i32
    return %c0_i32, %c0_i32_0, %c0_i32_1 : i32, i32, i32
  }
  func.func @transform_4(%arg0: i32, %arg1: i32) -> (i32, i32, i32) {
    %c0_i32 = arith.constant 0 : i32
    %c0_i32_0 = arith.constant 0 : i32
    %c0_i32_1 = arith.constant 0 : i32
    %c0_i32_2 = arith.constant 0 : i32
    return %c0_i32, %c0_i32_0, %c0_i32_1 : i32, i32, i32
  }
  func.func @transform_5(%arg0: i32, %arg1: i32) -> (i32, i32, i32) {
    %c0_i32 = arith.constant 0 : i32
    %c0_i32_0 = arith.constant 0 : i32
    %c0_i32_1 = arith.constant 0 : i32
    %c0_i32_2 = arith.constant 0 : i32
    return %c0_i32, %c0_i32_0, %c0_i32_1 : i32, i32, i32
  }
  func.func @transform_6(%arg0: i32, %arg1: i32) -> (i32, i32) {
    %c0_i32 = arith.constant 0 : i32
    %c0_i32_0 = arith.constant 0 : i32
    %c0_i32_1 = arith.constant 0 : i32
    return %c0_i32, %c0_i32_0 : i32, i32
  }
  func.func @transform_7(%arg0: i32, %arg1: i32) -> (i32, i32) {
    %c0_i32 = arith.constant 0 : i32
    %c0_i32_0 = arith.constant 0 : i32
    %c0_i32_1 = arith.constant 0 : i32
    return %c0_i32, %c0_i32_0 : i32, i32
  }
  func.func @transform_8(%arg0: i32, %arg1: i32) -> (i32, i32) {
    %c0_i32 = arith.constant 0 : i32
    %c0_i32_0 = arith.constant 0 : i32
    %c0_i32_1 = arith.constant 0 : i32
    return %c0_i32, %c0_i32_0 : i32, i32
  }
  func.func @transform_9(%arg0: i32, %arg1: i32) -> (i32, i32, i32) {
    %c0_i32 = arith.constant 0 : i32
    %c0_i32_0 = arith.constant 0 : i32
    return %arg0, %arg1, %c0_i32 : i32, i32, i32
  }
}

</mosaic_0001>

<llo_original>
// kernel: attention_forward.1
$region0: #{attention_forward.1}
  #allocation0 [shape = 'u32[]', space=smem, size = 0x4, offset = 0x4, fixed_abs, tag = 'smem constant byte address 0x4 - core index']
  #allocation1 [shape = 'u32[144,128]{1,0:T(1,128)}', space=vmem, size = 0x12000, scoped, tag = 'internal scratch']
  #allocation2 [shape = 'bf16[2,256,16]{2,1,0:T(16,128)(2,1)}', space=vmem, size = 0x20000, scoped, tag = 'scratch operand']
  #allocation3 [shape = 'bf16[2,256,16]{2,1,0:T(16,128)(2,1)}', space=vmem, size = 0x20000, scoped, tag = 'scratch operand']
  %s0 = inlined_call_operand.vmem [shape: bf16[2,256,32], index: 0, kind: input, shape index: {}]
  %s1 = inlined_call_operand.vmem [shape: bf16[2,32,32], index: 1, kind: input, shape index: {}]
  %s2 = inlined_call_operand.vmem [shape: f32[2,1,32], index: 2, kind: input, shape index: {}]
  %s3 = inlined_call_operand.vmem [shape: bf16[2,32,48], index: 3, kind: input, shape index: {}]
  %s4 = inlined_call_operand.vmem [shape: f32[2,1,48], index: 4, kind: input, shape index: {}]
  %s5 = inlined_call_operand.vmem [shape: bf16[2,16,32], index: 5, kind: input, shape index: {}]
  %s6 = inlined_call_operand.vmem [shape: f32[1,32], index: 6, kind: input, shape index: {}]
  %s7 = inlined_call_operand.vmem [shape: f32[256,16], index: 7, kind: input, shape index: {}]
  %s8 = inlined_call_operand.vmem [shape: f32[256,16], index: 8, kind: input, shape index: {}]
  %s9 = inlined_call_operand.vmem [shape: f32[2,256,32], index: 9, kind: output, shape index: {}]
  %s10 = sld [smem:[#allocation0]]
  $region80: #{attention_forward.1} parent=0
    _
  %s12 = ssub.s32 1, %s10
  %s13 = scalar_select 0, %s12, %s10
  loop: start=0, step=1, limit=6
  $region2: #{attention_forward.1} parent=0 // loop_pre_header
    _
  $region3: #{attention_forward.1} parent=0 // loop_header
    %s15 = sphi 0, %s19
    %p16 = scmp.ge.s32.totalorder %s15, 6
    %s22 = sphi 0, %s34
    %s23 = sphi 0, %s30
    %s24 = sphi 0, %s22
    %s25 = sphi 0, %s23
    %s26 = sphi 0, %s24
    %s27 = sphi 0, %s25
    %s37 = sphi 0, %s39
    %s40 = sphi 0, %s37
    %s41 = sphi 0, %s40
    %s57 = sphi 0, %s41
    %s61 = sphi 0, %s61
    %s63 = sphi 0, %s61
    %s64 = sphi 0, %s63
    %s78 = sphi 0, %s64
    %s82 = sphi 0, %s82
    %s84 = sphi 0, %s82
    %s85 = sphi 0, %s84
    %s99 = sphi 0, %s85
    %s103 = sphi 0, %s103
    %s105 = sphi 0, %s103
    %s106 = sphi 0, %s105
    %s120 = sphi 0, %s106
    %s124 = sphi 0, %s124
    %s126 = sphi 0, %s124
    %s127 = sphi 0, %s126
    %s141 = sphi 0, %s127
    %s145 = sphi 0, %s145
    %s147 = sphi 0, %s145
    %s148 = sphi 0, %s147
    %s162 = sphi 0, %s148
    %s166 = sphi 0, %s166
    %s168 = sphi 0, %s166
    %s169 = sphi 0, %s168
    %s183 = sphi 0, %s169
    %s187 = sphi 0, %s187
    %s189 = sphi 0, %s187
    %s190 = sphi 0, %s189
    %s204 = sphi 0, %s190
    %s208 = sphi 0, %s208
    %s210 = sphi 0, %s208
    %s211 = sphi 0, %s210
    %s225 = sphi 0, %s211
    %s233 = sphi 0, %s235
    %s236 = sphi 0, %s233
    %s237 = sphi 0, %s236
    %s253 = sphi 0, %s237
  $region4: #{attention_forward.1} parent=0 // loop_header_branch
    %18 = sbr.rel (%p16) target = $region8
  $region5: #{attention_forward.1} parent=0 // loop_body
    %s20 = ssub.s32 %s15, 1
    %s21 = ssub.s32 %s15, 2
    %s28 = sadd.s32 1, %s23
    %p29 = scmp.ge.s32.totalorder %s28, 2
    %s30 = scalar_select %p29, 0, %s28
    %s31 = sadd.s32 1, %s22
    %s32 = scalar_select %p29, %s31, %s22
    %p33 = scmp.ge.s32.totalorder %s32, 2
    %s34 = scalar_select %p33, 0, %s32
    %s35 = ssub.s32 %s22, %s34
    %p36 = scmp.eq.s32.totalorder %s35, 0
    %s38 = sadd.s32 %s37, 1
    %s39 = scalar_select %p36, %s37, %s38
    %p42 = pneg %p36
    %p43 = scmp.eq.s32.totalorder %s15, 3
    %p44 = por %p42, %p43
    %p45 = scmp.ne.s32.totalorder %s37, %s40
    %p46 = scmp.eq.s32.totalorder %s15, 0
    %p47 = por %p45, %p46
    %p48 = scmp.ne.s32.totalorder %s37, %s40
    %p49 = scmp.eq.s32.totalorder %s20, 3
    %p50 = por %p48, %p49
    %p51 = scmp.ne.s32.totalorder %s40, %s41
    %p52 = scmp.eq.s32.totalorder %s20, 0
    %p53 = por %p51, %p52
    %p54 = scmp.ne.s32.totalorder %s40, %s41
    %p55 = scmp.eq.s32.totalorder %s21, 3
    %p56 = por %p54, %p55
    %p58 = scmp.ne.s32.totalorder %s41, %s57
    %p59 = scmp.eq.s32.totalorder %s21, 0
    %p60 = por %p58, %p59
    %s62 = sadd.s32 %s61, 1
    %p65 = scmp.eq.s32.totalorder %s15, 3
    %p66 = scmp.ne.s32.totalorder %s61, %s63
    %p67 = scmp.eq.s32.totalorder %s15, 0
    %p68 = por %p66, %p67
    %p69 = scmp.ne.s32.totalorder %s61, %s63
    %p70 = scmp.eq.s32.totalorder %s20, 3
    %p71 = por %p69, %p70
    %p72 = scmp.ne.s32.totalorder %s63, %s64
    %p73 = scmp.eq.s32.totalorder %s20, 0
    %p74 = por %p72, %p73
    %p75 = scmp.ne.s32.totalorder %s63, %s64
    %p76 = scmp.eq.s32.totalorder %s21, 3
    %p77 = por %p75, %p76
    %p79 = scmp.ne.s32.totalorder %s64, %s78
    %p80 = scmp.eq.s32.totalorder %s21, 0
    %p81 = por %p79, %p80
    %s83 = sadd.s32 %s82, 1
    %p86 = scmp.eq.s32.totalorder %s15, 3
    %p87 = scmp.ne.s32.totalorder %s82, %s84
    %p88 = scmp.eq.s32.totalorder %s15, 0
    %p89 = por %p87, %p88
    %p90 = scmp.ne.s32.totalorder %s82, %s84
    %p91 = scmp.eq.s32.totalorder %s20, 3
    %p92 = por %p90, %p91
    %p93 = scmp.ne.s32.totalorder %s84, %s85
    %p94 = scmp.eq.s32.totalorder %s20, 0
    %p95 = por %p93, %p94
    %p96 = scmp.ne.s32.totalorder %s84, %s85
    %p97 = scmp.eq.s32.totalorder %s21, 3
    %p98 = por %p96, %p97
    %p100 = scmp.ne.s32.totalorder %s85, %s99
    %p101 = scmp.eq.s32.totalorder %s21, 0
    %p102 = por %p100, %p101
    %s104 = sadd.s32 %s103, 1
    %p107 = scmp.eq.s32.totalorder %s15, 3
    %p108 = scmp.ne.s32.totalorder %s103, %s105
    %p109 = scmp.eq.s32.totalorder %s15, 0
    %p110 = por %p108, %p109
    %p111 = scmp.ne.s32.totalorder %s103, %s105
    %p112 = scmp.eq.s32.totalorder %s20, 3
    %p113 = por %p111, %p112
    %p114 = scmp.ne.s32.totalorder %s105, %s106
    %p115 = scmp.eq.s32.totalorder %s20, 0
    %p116 = por %p114, %p115
    %p117 = scmp.ne.s32.totalorder %s105, %s106
    %p118 = scmp.eq.s32.totalorder %s21, 3
    %p119 = por %p117, %p118
    %p121 = scmp.ne.s32.totalorder %s106, %s120
    %p122 = scmp.eq.s32.totalorder %s21, 0
    %p123 = por %p121, %p122
    %s125 = sadd.s32 %s124, 1
    %p128 = scmp.eq.s32.totalorder %s15, 3
    %p129 = scmp.ne.s32.totalorder %s124, %s126
    %p130 = scmp.eq.s32.totalorder %s15, 0
    %p131 = por %p129, %p130
    %p132 = scmp.ne.s32.totalorder %s124, %s126
    %p133 = scmp.eq.s32.totalorder %s20, 3
    %p134 = por %p132, %p133
    %p135 = scmp.ne.s32.totalorder %s126, %s127
    %p136 = scmp.eq.s32.totalorder %s20, 0
    %p137 = por %p135, %p136
    %p138 = scmp.ne.s32.totalorder %s126, %s127
    %p139 = scmp.eq.s32.totalorder %s21, 3
    %p140 = por %p138, %p139
    %p142 = scmp.ne.s32.totalorder %s127, %s141
    %p143 = scmp.eq.s32.totalorder %s21, 0
    %p144 = por %p142, %p143
    %s146 = sadd.s32 %s145, 1
    %p149 = scmp.eq.s32.totalorder %s15, 3
    %p150 = scmp.ne.s32.totalorder %s145, %s147
    %p151 = scmp.eq.s32.totalorder %s15, 0
    %p152 = por %p150, %p151
    %p153 = scmp.ne.s32.totalorder %s145, %s147
    %p154 = scmp.eq.s32.totalorder %s20, 3
    %p155 = por %p153, %p154
    %p156 = scmp.ne.s32.totalorder %s147, %s148
    %p157 = scmp.eq.s32.totalorder %s20, 0
    %p158 = por %p156, %p157
    %p159 = scmp.ne.s32.totalorder %s147, %s148
    %p160 = scmp.eq.s32.totalorder %s21, 3
    %p161 = por %p159, %p160
    %p163 = scmp.ne.s32.totalorder %s148, %s162
    %p164 = scmp.eq.s32.totalorder %s21, 0
    %p165 = por %p163, %p164
    %s167 = sadd.s32 %s166, 1
    %p170 = scmp.eq.s32.totalorder %s15, 3
    %p171 = scmp.ne.s32.totalorder %s166, %s168
    %p172 = scmp.eq.s32.totalorder %s15, 0
    %p173 = por %p171, %p172
    %p174 = scmp.ne.s32.totalorder %s166, %s168
    %p175 = scmp.eq.s32.totalorder %s20, 3
    %p176 = por %p174, %p175
    %p177 = scmp.ne.s32.totalorder %s168, %s169
    %p178 = scmp.eq.s32.totalorder %s20, 0
    %p179 = por %p177, %p178
    %p180 = scmp.ne.s32.totalorder %s168, %s169
    %p181 = scmp.eq.s32.totalorder %s21, 3
    %p182 = por %p180, %p181
    %p184 = scmp.ne.s32.totalorder %s169, %s183
    %p185 = scmp.eq.s32.totalorder %s21, 0
    %p186 = por %p184, %p185
    %s188 = sadd.s32 %s187, 1
    %p191 = scmp.eq.s32.totalorder %s15, 3
    %p192 = scmp.ne.s32.totalorder %s187, %s189
    %p193 = scmp.eq.s32.totalorder %s15, 0
    %p194 = por %p192, %p193
    %p195 = scmp.ne.s32.totalorder %s187, %s189
    %p196 = scmp.eq.s32.totalorder %s20, 3
    %p197 = por %p195, %p196
    %p198 = scmp.ne.s32.totalorder %s189, %s190
    %p199 = scmp.eq.s32.totalorder %s20, 0
    %p200 = por %p198, %p199
    %p201 = scmp.ne.s32.totalorder %s189, %s190
    %p202 = scmp.eq.s32.totalorder %s21, 3
    %p203 = por %p201, %p202
    %p205 = scmp.ne.s32.totalorder %s190, %s204
    %p206 = scmp.eq.s32.totalorder %s21, 0
    %p207 = por %p205, %p206
    %s209 = sadd.s32 %s208, 1
    %p212 = scmp.eq.s32.totalorder %s15, 3
    %p213 = scmp.ne.s32.totalorder %s208, %s210
    %p214 = scmp.eq.s32.totalorder %s15, 0
    %p215 = por %p213, %p214
    %p216 = scmp.ne.s32.totalorder %s208, %s210
    %p217 = scmp.eq.s32.totalorder %s20, 3
    %p218 = por %p216, %p217
    %p219 = scmp.ne.s32.totalorder %s210, %s211
    %p220 = scmp.eq.s32.totalorder %s20, 0
    %p221 = por %p219, %p220
    %p222 = scmp.ne.s32.totalorder %s210, %s211
    %p223 = scmp.eq.s32.totalorder %s21, 3
    %p224 = por %p222, %p223
    %p226 = scmp.ne.s32.totalorder %s211, %s225
    %p227 = scmp.eq.s32.totalorder %s21, 0
    %p228 = por %p226, %p227
    %s229 = ssub.s32 %s22, %s34
    %s230 = ssub.s32 %s23, %s30
    %s231 = sor.u32 %s229, %s230
    %p232 = scmp.eq.s32.totalorder %s231, 0
    %s234 = sadd.s32 %s233, 1
    %s235 = scalar_select %p232, %s233, %s234
    %p238 = pneg %p232
    %p239 = scmp.eq.s32.totalorder %s15, 3
    %p240 = por %p238, %p239
    %p241 = scmp.ne.s32.totalorder %s233, %s236
    %p242 = scmp.eq.s32.totalorder %s15, 0
    %p243 = por %p241, %p242
    %p244 = scmp.ne.s32.totalorder %s233, %s236
    %p245 = scmp.eq.s32.totalorder %s20, 3
    %p246 = por %p244, %p245
    %p247 = scmp.ne.s32.totalorder %s236, %s237
    %p248 = scmp.eq.s32.totalorder %s20, 0
    %p249 = por %p247, %p248
    %p250 = scmp.ne.s32.totalorder %s236, %s237
    %p251 = scmp.eq.s32.totalorder %s21, 3
    %p252 = por %p250, %p251
    %p254 = scmp.ne.s32.totalorder %s237, %s253
    %p255 = scmp.eq.s32.totalorder %s21, 0
    %p256 = por %p254, %p255
    %p257 = scmp.le.s32.totalorder 1, %s15
    %p258 = scmp.lt.s32.totalorder %s15, 5
    %p259 = pnand %p257, %p258
    %p260 = pneg %p259
    // Predicated region
    $region9: #{attention_forward.1} parent=5 // pred_check
      _
    $region10: #{attention_forward.1} parent=5 // pred_check_branch
      %262 = sbr.rel (%p259) target = $region12
    $region11: #{attention_forward.1} parent=5 // pred_region
      %s263 = ssub.s32 %s15, 1
      // Predicated region
      $region13: #{attention_forward.1} parent=11 // pred_check
        %p264 = pneg %p74
      $region14: #{attention_forward.1} parent=11 // pred_check_branch
        %266 = sbr.rel (%p264) target = $region16
      $region15: #{attention_forward.1} parent=11 // pred_region
        _
      $region16: #{attention_forward.1} parent=11 // pred_fallthru
        _
      // Predicated region
      $region17: #{attention_forward.1} parent=11 // pred_check
        %p267 = pneg %p95
      $region18: #{attention_forward.1} parent=11 // pred_check_branch
        %269 = sbr.rel (%p267) target = $region20
      $region19: #{attention_forward.1} parent=11 // pred_region
        _
      $region20: #{attention_forward.1} parent=11 // pred_fallthru
        _
      // Predicated region
      $region21: #{attention_forward.1} parent=11 // pred_check
        %p270 = pneg %p116
      $region22: #{attention_forward.1} parent=11 // pred_check_branch
        %272 = sbr.rel (%p270) target = $region24
      $region23: #{attention_forward.1} parent=11 // pred_region
        _
      $region24: #{attention_forward.1} parent=11 // pred_fallthru
        _
      // Predicated region
      $region25: #{attention_forward.1} parent=11 // pred_check
        %p273 = pneg %p137
      $region26: #{attention_forward.1} parent=11 // pred_check_branch
        %275 = sbr.rel (%p273) target = $region28
      $region27: #{attention_forward.1} parent=11 // pred_region
        _
      $region28: #{attention_forward.1} parent=11 // pred_fallthru
        _
      // Predicated region
      $region29: #{attention_forward.1} parent=11 // pred_check
        %p276 = pneg %p158
      $region30: #{attention_forward.1} parent=11 // pred_check_branch
        %278 = sbr.rel (%p276) target = $region32
      $region31: #{attention_forward.1} parent=11 // pred_region
        _
      $region32: #{attention_forward.1} parent=11 // pred_fallthru
        _
      // Predicated region
      $region33: #{attention_forward.1} parent=11 // pred_check
        %p279 = pneg %p179
      $region34: #{attention_forward.1} parent=11 // pred_check_branch
        %281 = sbr.rel (%p279) target = $region36
      $region35: #{attention_forward.1} parent=11 // pred_region
        _
      $region36: #{attention_forward.1} parent=11 // pred_fallthru
        _
      // Predicated region
      $region37: #{attention_forward.1} parent=11 // pred_check
        %p282 = pneg %p200
      $region38: #{attention_forward.1} parent=11 // pred_check_branch
        %284 = sbr.rel (%p282) target = $region40
      $region39: #{attention_forward.1} parent=11 // pred_region
        _
      $region40: #{attention_forward.1} parent=11 // pred_fallthru
        _
      // Predicated region
      $region41: #{attention_forward.1} parent=11 // pred_check
        %p285 = pneg %p221
      $region42: #{attention_forward.1} parent=11 // pred_check_branch
        %287 = sbr.rel (%p285) target = $region44
      $region43: #{attention_forward.1} parent=11 // pred_region
        _
      $region44: #{attention_forward.1} parent=11 // pred_fallthru
        _
    $region12: #{attention_forward.1} parent=5 // pred_fallthru
      _
    %p288 = scmp.lt.s32.totalorder %s15, 4
    // Predicated region
    $region45: #{attention_forward.1} parent=5 // pred_check
      %p289 = pneg %p288
    $region46: #{attention_forward.1} parent=5 // pred_check_branch
      %291 = sbr.rel (%p289) target = $region48
    $region47: #{attention_forward.1} parent=5 // pred_region
      // Predicated region
      $region49: #{attention_forward.1} parent=47 // pred_check
        %p292 = pneg %p47
      $region50: #{attention_forward.1} parent=47 // pred_check_branch
        %294 = sbr.rel (%p292) target = $region52
      $region51: #{attention_forward.1} parent=47 // pred_region
        %p295 = scmp.lt.s32.totalorder %s22, 1
        %s296 = scalar_select %p295, %s22, 1
        %s297 = smul.addr %s296, 32
        %s298 = smul.addr %s297, 4
        %s299 = scalar_lea.vmem %s0, %s298
      $region52: #{attention_forward.1} parent=47 // pred_fallthru
        _
    $region48: #{attention_forward.1} parent=5 // pred_fallthru
      _
    %p300 = scmp.le.s32.totalorder 1, %s15
    %p301 = scmp.lt.s32.totalorder %s15, 5
    %p302 = pnand %p300, %p301
    %p303 = pneg %p302
    // Predicated region
    $region53: #{attention_forward.1} parent=5 // pred_check
      _
    $region54: #{attention_forward.1} parent=5 // pred_check_branch
      %305 = sbr.rel (%p302) target = $region56
    $region55: #{attention_forward.1} parent=5 // pred_region
      %s306 = ssub.s32 %s15, 1
      %p307 = scmp.lt.s32.totalorder %s24, 1
      %s308 = scalar_select %p307, %s24, 1
      %s309 = smul.addr %s308, 32
      %s310 = smul.addr %s309, 4
      %s311 = scalar_lea.vmem %s0, %s310
      %p312 = pneg %p53
      %p313 = pneg %p50
      %p314 = pneg %p74
      %p315 = pneg %p71
      %p316 = pneg %p95
      %p317 = pneg %p92
      %p318 = pneg %p116
      %p319 = pneg %p113
      %p320 = pneg %p137
      %p321 = pneg %p134
      %p322 = pneg %p158
      %p323 = pneg %p155
      %p324 = pneg %p179
      %p325 = pneg %p176
      %p326 = pneg %p200
      %p327 = pneg %p197
      %p328 = pneg %p221
      %p329 = pneg %p218
      %p330 = pneg %p249
      %p331 = pneg %p246
      %s332 = smul.u32 16, %s25
      %p333 = scmp.lt.s32.totalorder %s24, 1
      %s334 = scalar_select %p333, %s24, 1
      %p335 = scmp.lt.s32.totalorder %s332, 31
      %s336 = scalar_select %p335, %s332, 31
      %s337 = smul.addr %s334, 32
      %s338 = sadd.s32 %s336, %s337
      %s339 = smul.addr %s338, 8
      %s340 = scalar_lea.vmem %s9, %s339
      %p341 = scmp.lt.s32.totalorder %s24, 1
      %s342 = scalar_select %p341, %s24, 1
      %s343 = smul.addr %s342, 32
      %s344 = smul.addr %s343, 4
      %s345 = scalar_lea.vmem %s0, %s344
      %s346 = smul.u32 16, %s25
      %p347 = scmp.lt.s32.totalorder %s24, 1
      %s348 = scalar_select %p347, %s24, 1
      %p349 = scmp.lt.s32.totalorder %s346, 31
      %s350 = scalar_select %p349, %s346, 31
      %s351 = smul.addr %s348, 32
      %s352 = sadd.s32 %s350, %s351
      %s353 = smul.addr %s352, 8
      %s354 = scalar_lea.vmem %s9, %s353
      %s355 = smul.u32 16, %s25
      %p357 = scmp.eq.s32.totalorder %s25, 0
      // Predicated region
      $region57: #{attention_forward.1} parent=55 // pred_check
        %p358 = pneg %p357
      $region58: #{attention_forward.1} parent=55 // pred_check_branch
        %360 = sbr.rel (%p358) target = $region60
      $region59: #{attention_forward.1} parent=55 // pred_region
        %v361 = vld [vmem:[%s345] sm:$0xf]
        %v362 = vld [vmem:[%s345 + $0x4] sm:$0xf]
        %v363 = vld [vmem:[%s345 + $0x8] sm:$0xf]
        %v364 = vld [vmem:[%s345 + $0xc] sm:$0xf]
        %v365 = vld [vmem:[%s345 + $0x10] sm:$0xf]
        %v366 = vld [vmem:[%s345 + $0x14] sm:$0xf]
        %v367 = vld [vmem:[%s345 + $0x18] sm:$0xf]
        %v368 = vld [vmem:[%s345 + $0x1c] sm:$0xf]
        %v369 = vld [vmem:[%s345 + $0x20] sm:$0xf]
        %v370 = vld [vmem:[%s345 + $0x24] sm:$0xf]
        %v371 = vld [vmem:[%s345 + $0x28] sm:$0xf]
        %v372 = vld [vmem:[%s345 + $0x2c] sm:$0xf]
        %v373 = vld [vmem:[%s345 + $0x30] sm:$0xf]
        %v374 = vld [vmem:[%s345 + $0x34] sm:$0xf]
        %v375 = vld [vmem:[%s345 + $0x38] sm:$0xf]
        %v376 = vld [vmem:[%s345 + $0x3c] sm:$0xf]
        %v377 = vld [vmem:[%s345 + $0x40] sm:$0xf]
        %v378 = vld [vmem:[%s345 + $0x44] sm:$0xf]
        %v379 = vld [vmem:[%s345 + $0x48] sm:$0xf]
        %v380 = vld [vmem:[%s345 + $0x4c] sm:$0xf]
        %v381 = vld [vmem:[%s345 + $0x50] sm:$0xf]
        %v382 = vld [vmem:[%s345 + $0x54] sm:$0xf]
        %v383 = vld [vmem:[%s345 + $0x58] sm:$0xf]
        %v384 = vld [vmem:[%s345 + $0x5c] sm:$0xf]
        %v385 = vld [vmem:[%s345 + $0x60] sm:$0xf]
        %v386 = vld [vmem:[%s345 + $0x64] sm:$0xf]
        %v387 = vld [vmem:[%s345 + $0x68] sm:$0xf]
        %v388 = vld [vmem:[%s345 + $0x6c] sm:$0xf]
        %v389 = vld [vmem:[%s345 + $0x70] sm:$0xf]
        %v390 = vld [vmem:[%s345 + $0x74] sm:$0xf]
        %v391 = vld [vmem:[%s345 + $0x78] sm:$0xf]
        %v392 = vld [vmem:[%s345 + $0x7c] sm:$0xf]
        %v393 = vld [vmem:[%s7] sm:$0xff]
        %v394 = vld [vmem:[%s7 + $0x8] sm:$0xff]
        %v395 = vld [vmem:[%s7 + $0x10] sm:$0xff]
        %v396 = vld [vmem:[%s7 + $0x18] sm:$0xff]
        %v397 = vld [vmem:[%s7 + $0x20] sm:$0xff]
        %v398 = vld [vmem:[%s7 + $0x28] sm:$0xff]
        %v399 = vld [vmem:[%s7 + $0x30] sm:$0xff]
        %v400 = vld [vmem:[%s7 + $0x38] sm:$0xff]
        %v401 = vld [vmem:[%s7 + $0x40] sm:$0xff]
        %v402 = vld [vmem:[%s7 + $0x48] sm:$0xff]
        %v403 = vld [vmem:[%s7 + $0x50] sm:$0xff]
        %v404 = vld [vmem:[%s7 + $0x58] sm:$0xff]
        %v405 = vld [vmem:[%s7 + $0x60] sm:$0xff]
        %v406 = vld [vmem:[%s7 + $0x68] sm:$0xff]
        %v407 = vld [vmem:[%s7 + $0x70] sm:$0xff]
        %v408 = vld [vmem:[%s7 + $0x78] sm:$0xff]
        %v409 = vld [vmem:[%s7 + $0x80] sm:$0xff]
        %v410 = vld [vmem:[%s7 + $0x88] sm:$0xff]
        %v411 = vld [vmem:[%s7 + $0x90] sm:$0xff]
        %v412 = vld [vmem:[%s7 + $0x98] sm:$0xff]
        %v413 = vld [vmem:[%s7 + $0xa0] sm:$0xff]
        %v414 = vld [vmem:[%s7 + $0xa8] sm:$0xff]
        %v415 = vld [vmem:[%s7 + $0xb0] sm:$0xff]
        %v416 = vld [vmem:[%s7 + $0xb8] sm:$0xff]
        %v417 = vld [vmem:[%s7 + $0xc0] sm:$0xff]
        %v418 = vld [vmem:[%s7 + $0xc8] sm:$0xff]
        %v419 = vld [vmem:[%s7 + $0xd0] sm:$0xff]
        %v420 = vld [vmem:[%s7 + $0xd8] sm:$0xff]
        %v421 = vld [vmem:[%s7 + $0xe0] sm:$0xff]
        %v422 = vld [vmem:[%s7 + $0xe8] sm:$0xff]
        %v423 = vld [vmem:[%s7 + $0xf0] sm:$0xff]
        %v424 = vld [vmem:[%s7 + $0xf8] sm:$0xff]
        %v425 = vld [vmem:[%s8] sm:$0xff]
        %v426 = vld [vmem:[%s8 + $0x8] sm:$0xff]
        %v427 = vld [vmem:[%s8 + $0x10] sm:$0xff]
        %v428 = vld [vmem:[%s8 + $0x18] sm:$0xff]
        %v429 = vld [vmem:[%s8 + $0x20] sm:$0xff]
        %v430 = vld [vmem:[%s8 + $0x28] sm:$0xff]
        %v431 = vld [vmem:[%s8 + $0x30] sm:$0xff]
        %v432 = vld [vmem:[%s8 + $0x38] sm:$0xff]
        %v433 = vld [vmem:[%s8 + $0x40] sm:$0xff]
        %v434 = vld [vmem:[%s8 + $0x48] sm:$0xff]
        %v435 = vld [vmem:[%s8 + $0x50] sm:$0xff]
        %v436 = vld [vmem:[%s8 + $0x58] sm:$0xff]
        %v437 = vld [vmem:[%s8 + $0x60] sm:$0xff]
        %v438 = vld [vmem:[%s8 + $0x68] sm:$0xff]
        %v439 = vld [vmem:[%s8 + $0x70] sm:$0xff]
        %v440 = vld [vmem:[%s8 + $0x78] sm:$0xff]
        %v441 = vld [vmem:[%s8 + $0x80] sm:$0xff]
        %v442 = vld [vmem:[%s8 + $0x88] sm:$0xff]
        %v443 = vld [vmem:[%s8 + $0x90] sm:$0xff]
        %v444 = vld [vmem:[%s8 + $0x98] sm:$0xff]
        %v445 = vld [vmem:[%s8 + $0xa0] sm:$0xff]
        %v446 = vld [vmem:[%s8 + $0xa8] sm:$0xff]
        %v447 = vld [vmem:[%s8 + $0xb0] sm:$0xff]
        %v448 = vld [vmem:[%s8 + $0xb8] sm:$0xff]
        %v449 = vld [vmem:[%s8 + $0xc0] sm:$0xff]
        %v450 = vld [vmem:[%s8 + $0xc8] sm:$0xff]
        %v451 = vld [vmem:[%s8 + $0xd0] sm:$0xff]
        %v452 = vld [vmem:[%s8 + $0xd8] sm:$0xff]
        %v453 = vld [vmem:[%s8 + $0xe0] sm:$0xff]
        %v454 = vld [vmem:[%s8 + $0xe8] sm:$0xff]
        %v455 = vld [vmem:[%s8 + $0xf0] sm:$0xff]
        %v456 = vld [vmem:[%s8 + $0xf8] sm:$0xff]
        %v457 = vld [vmem:[%s3] sm:$0xf]
        %v458 = vld [vmem:[%s3 + $0x4] sm:$0xf]
        %v459 = vld [vmem:[%s3 + $0x8] sm:$0xf]
        %v460 = vld [vmem:[%s3 + $0xc] sm:$0xf]
        %v461 = vld [vmem:[%s4] sm:$0x1]
        %v463 = vlaneseq
        %v464 = vshrl.u32 %v463, 7
        %v465 = vsub.s32 0, %v464
        %v466 = vrot.slane %v461, %v465
        %v500 = vunpack.c.l.b16 %v361
        %v501 = vunpack.c.l.b16 %v362
        %v502 = vunpack.c.l.b16 %v363
        %v503 = vunpack.c.l.b16 %v364
        %v504 = vunpack.c.l.b16 %v365
        %v505 = vunpack.c.l.b16 %v366
        %v506 = vunpack.c.l.b16 %v367
        %v507 = vunpack.c.l.b16 %v368
        %v508 = vunpack.c.l.b16 %v369
        %v509 = vunpack.c.l.b16 %v370
        %v510 = vunpack.c.l.b16 %v371
        %v511 = vunpack.c.l.b16 %v372
        %v512 = vunpack.c.l.b16 %v373
        %v513 = vunpack.c.l.b16 %v374
        %v514 = vunpack.c.l.b16 %v375
        %v515 = vunpack.c.l.b16 %v376
        %v516 = vunpack.c.l.b16 %v377
        %v517 = vunpack.c.l.b16 %v378
        %v518 = vunpack.c.l.b16 %v379
        %v519 = vunpack.c.l.b16 %v380
        %v520 = vunpack.c.l.b16 %v381
        %v521 = vunpack.c.l.b16 %v382
        %v522 = vunpack.c.l.b16 %v383
        %v523 = vunpack.c.l.b16 %v384
        %v524 = vunpack.c.l.b16 %v385
        %v525 = vunpack.c.l.b16 %v386
        %v526 = vunpack.c.l.b16 %v387
        %v527 = vunpack.c.l.b16 %v388
        %v528 = vunpack.c.l.b16 %v389
        %v529 = vunpack.c.l.b16 %v390
        %v530 = vunpack.c.l.b16 %v391
        %v531 = vunpack.c.l.b16 %v392
        %v532 = vpack.c.b16 %v501, %v500
        %v533 = vpack.c.b16 %v503, %v502
        %v534 = vpack.c.b16 %v505, %v504
        %v535 = vpack.c.b16 %v507, %v506
        %v536 = vpack.c.b16 %v509, %v508
        %v537 = vpack.c.b16 %v511, %v510
        %v538 = vpack.c.b16 %v513, %v512
        %v539 = vpack.c.b16 %v515, %v514
        %v540 = vpack.c.b16 %v517, %v516
        %v541 = vpack.c.b16 %v519, %v518
        %v542 = vpack.c.b16 %v521, %v520
        %v543 = vpack.c.b16 %v523, %v522
        %v544 = vpack.c.b16 %v525, %v524
        %v545 = vpack.c.b16 %v527, %v526
        %v546 = vpack.c.b16 %v529, %v528
        %v547 = vpack.c.b16 %v531, %v530
        %v552 = vunpack.c.l.b16 %v457
        %v553 = vunpack.c.l.b16 %v458
        %v554 = vunpack.c.l.b16 %v459
        %v555 = vunpack.c.l.b16 %v460
        %v556 = vpack.c.b16 %v553, %v552
        %v557 = vpack.c.b16 %v555, %v554
        %vm560 = vcmask 261120
        %v562 = vsel %vm560, %v532, 0
        %v565 = vsel %vm560, %v533, 0
        %v568 = vsel %vm560, %v534, 0
        %v571 = vsel %vm560, %v535, 0
        %v574 = vsel %vm560, %v536, 0
        %v577 = vsel %vm560, %v537, 0
        %v580 = vsel %vm560, %v538, 0
        %v583 = vsel %vm560, %v539, 0
        %v586 = vsel %vm560, %v540, 0
        %v589 = vsel %vm560, %v541, 0
        %v592 = vsel %vm560, %v542, 0
        %v595 = vsel %vm560, %v543, 0
        %v598 = vsel %vm560, %v544, 0
        %v601 = vsel %vm560, %v545, 0
        %v604 = vsel %vm560, %v546, 0
        %v607 = vsel %vm560, %v547, 0
        %609 = vmatprep.subr.bf16.mxu0 0
        %610 = vmatpush1.bf16.msra.mxu0 %v556
        %611 = vmatprep.subr.bf16.mxu0 0
        %612 = vmatpush1.bf16.msra.mxu0 %v557
        %613 = vmatprep.subr.bf16.mxu0 0
        %614 = vmatpush1.bf16.msra.mxu0 0
        %615 = vmatprep.subr.bf16.mxu0 0
        %616 = vmatpush1.bf16.msra.mxu0 0
        %617 = vmatprep.subr.bf16.mxu0 0
        %618 = vmatpush1.bf16.msra.mxu0 0
        %619 = vmatprep.subr.bf16.mxu0 0
        %620 = vmatpush1.bf16.msra.mxu0 0
        %621 = vmatprep.subr.bf16.mxu0 0
        %622 = vmatpush1.bf16.msra.mxu0 0
        %623 = vmatprep.subr.bf16.mxu0 0
        %624 = vmatpush1.bf16.msra.mxu0 0
        %625 = vmatprep.subr.bf16.mxu0 0
        %626 = vmatpush1.bf16.msra.mxu0 0
        %627 = vmatprep.subr.bf16.mxu0 0
        %628 = vmatpush1.bf16.msra.mxu0 0
        %629 = vmatprep.subr.bf16.mxu0 0
        %630 = vmatpush1.bf16.msra.mxu0 0
        %631 = vmatprep.subr.bf16.mxu0 0
        %632 = vmatpush1.bf16.msra.mxu0 0
        %633 = vmatprep.subr.bf16.mxu0 0
        %634 = vmatpush1.bf16.msra.mxu0 0
        %635 = vmatprep.subr.bf16.mxu0 0
        %636 = vmatpush1.bf16.msra.mxu0 0
        %637 = vmatprep.subr.bf16.mxu0 0
        %638 = vmatpush1.bf16.msra.mxu0 0
        %639 = vmatprep.subr.bf16.mxu0 0
        %640 = vmatpush1.bf16.msra.mxu0 0
        %641 = vmatprep.mubr.bf16.mxu0 0
        %642 = vmatmul.mubr.bf16.gmra.mrb[0].mxu0 %v562
        %v643 = vpop.f32.mrb[0].mxu0
        %v644 = vadd.f32 %v466, %v643
        %v645 = vpop.f32.mrb[0].mxu0
        %v646 = vpop.f32.mrb[0].mxu0
        %v647 = vadd.f32 %v466, %v646
        %v648 = vpop.f32.mrb[0].mxu0
        %649 = vmatprep.mubr.bf16.mxu0 0
        %650 = vmatmul.mubr.bf16.gmra.mrb[0].mxu0 %v565
        %v651 = vpop.f32.mrb[0].mxu0
        %v652 = vadd.f32 %v466, %v651
        %v653 = vpop.f32.mrb[0].mxu0
        %v654 = vpop.f32.mrb[0].mxu0
        %v655 = vadd.f32 %v466, %v654
        %v656 = vpop.f32.mrb[0].mxu0
        %657 = vmatprep.mubr.bf16.mxu0 0
        %658 = vmatmul.mubr.bf16.gmra.mrb[0].mxu0 %v568
        %v659 = vpop.f32.mrb[0].mxu0
        %v660 = vadd.f32 %v466, %v659
        %v661 = vpop.f32.mrb[0].mxu0
        %v662 = vpop.f32.mrb[0].mxu0
        %v663 = vadd.f32 %v466, %v662
        %v664 = vpop.f32.mrb[0].mxu0
        %665 = vmatprep.mubr.bf16.mxu0 0
        %666 = vmatmul.mubr.bf16.gmra.mrb[0].mxu0 %v571
        %v667 = vpop.f32.mrb[0].mxu0
        %v668 = vadd.f32 %v466, %v667
        %v669 = vpop.f32.mrb[0].mxu0
        %v670 = vpop.f32.mrb[0].mxu0
        %v671 = vadd.f32 %v466, %v670
        %v672 = vpop.f32.mrb[0].mxu0
        %673 = vmatprep.mubr.bf16.mxu0 0
        %674 = vmatmul.mubr.bf16.gmra.mrb[0].mxu0 %v574
        %v675 = vpop.f32.mrb[0].mxu0
        %v676 = vadd.f32 %v466, %v675
        %v677 = vpop.f32.mrb[0].mxu0
        %v678 = vpop.f32.mrb[0].mxu0
        %v679 = vadd.f32 %v466, %v678
        %v680 = vpop.f32.mrb[0].mxu0
        %681 = vmatprep.mubr.bf16.mxu0 0
        %682 = vmatmul.mubr.bf16.gmra.mrb[0].mxu0 %v577
        %v683 = vpop.f32.mrb[0].mxu0
        %v684 = vadd.f32 %v466, %v683
        %v685 = vpop.f32.mrb[0].mxu0
        %v686 = vpop.f32.mrb[0].mxu0
        %v687 = vadd.f32 %v466, %v686
        %v688 = vpop.f32.mrb[0].mxu0
        %689 = vmatprep.mubr.bf16.mxu0 0
        %690 = vmatmul.mubr.bf16.gmra.mrb[0].mxu0 %v580
        %v691 = vpop.f32.mrb[0].mxu0
        %v692 = vadd.f32 %v466, %v691
        %v693 = vpop.f32.mrb[0].mxu0
        %v694 = vpop.f32.mrb[0].mxu0
        %v695 = vadd.f32 %v466, %v694
        %v696 = vpop.f32.mrb[0].mxu0
        %697 = vmatprep.mubr.bf16.mxu0 0
        %698 = vmatmul.mubr.bf16.gmra.mrb[0].mxu0 %v583
        %v699 = vpop.f32.mrb[0].mxu0
        %v700 = vadd.f32 %v466, %v699
        %v701 = vpop.f32.mrb[0].mxu0
        %v702 = vpop.f32.mrb[0].mxu0
        %v703 = vadd.f32 %v466, %v702
        %v704 = vpop.f32.mrb[0].mxu0
        %705 = vmatprep.mubr.bf16.mxu0 0
        %706 = vmatmul.mubr.bf16.gmra.mrb[0].mxu0 %v586
        %v707 = vpop.f32.mrb[0].mxu0
        %v708 = vadd.f32 %v466, %v707
        %v709 = vpop.f32.mrb[0].mxu0
        %v710 = vpop.f32.mrb[0].mxu0
        %v711 = vadd.f32 %v466, %v710
        %v712 = vpop.f32.mrb[0].mxu0
        %713 = vmatprep.mubr.bf16.mxu0 0
        %714 = vmatmul.mubr.bf16.gmra.mrb[0].mxu0 %v589
        %v715 = vpop.f32.mrb[0].mxu0
        %v716 = vadd.f32 %v466, %v715
        %v717 = vpop.f32.mrb[0].mxu0
        %v718 = vpop.f32.mrb[0].mxu0
        %v719 = vadd.f32 %v466, %v718
        %v720 = vpop.f32.mrb[0].mxu0
        %721 = vmatprep.mubr.bf16.mxu0 0
        %722 = vmatmul.mubr.bf16.gmra.mrb[0].mxu0 %v592
        %v723 = vpop.f32.mrb[0].mxu0
        %v724 = vadd.f32 %v466, %v723
        %v725 = vpop.f32.mrb[0].mxu0
        %v726 = vpop.f32.mrb[0].mxu0
        %v727 = vadd.f32 %v466, %v726
        %v728 = vpop.f32.mrb[0].mxu0
        %729 = vmatprep.mubr.bf16.mxu0 0
        %730 = vmatmul.mubr.bf16.gmra.mrb[0].mxu0 %v595
        %v731 = vpop.f32.mrb[0].mxu0
        %v732 = vadd.f32 %v466, %v731
        %v733 = vpop.f32.mrb[0].mxu0
        %v734 = vpop.f32.mrb[0].mxu0
        %v735 = vadd.f32 %v466, %v734
        %v736 = vpop.f32.mrb[0].mxu0
        %737 = vmatprep.mubr.bf16.mxu0 0
        %738 = vmatmul.mubr.bf16.gmra.mrb[0].mxu0 %v598
        %v739 = vpop.f32.mrb[0].mxu0
        %v740 = vadd.f32 %v466, %v739
        %v741 = vpop.f32.mrb[0].mxu0
        %v742 = vpop.f32.mrb[0].mxu0
        %v743 = vadd.f32 %v466, %v742
        %v744 = vpop.f32.mrb[0].mxu0
        %745 = vmatprep.mubr.bf16.mxu0 0
        %746 = vmatmul.mubr.bf16.gmra.mrb[0].mxu0 %v601
        %v747 = vpop.f32.mrb[0].mxu0
        %v748 = vadd.f32 %v466, %v747
        %v749 = vpop.f32.mrb[0].mxu0
        %v750 = vpop.f32.mrb[0].mxu0
        %v751 = vadd.f32 %v466, %v750
        %v752 = vpop.f32.mrb[0].mxu0
        %753 = vmatprep.mubr.bf16.mxu0 0
        %754 = vmatmul.mubr.bf16.gmra.mrb[0].mxu0 %v604
        %v755 = vpop.f32.mrb[0].mxu0
        %v756 = vadd.f32 %v466, %v755
        %v757 = vpop.f32.mrb[0].mxu0
        %v758 = vpop.f32.mrb[0].mxu0
        %v759 = vadd.f32 %v466, %v758
        %v760 = vpop.f32.mrb[0].mxu0
        %761 = vmatprep.mubr.bf16.mxu0 0
        %762 = vmatmul.mubr.bf16.gmra.mrb[0].mxu0 %v607
        %v763 = vpop.f32.mrb[0].mxu0
        %v764 = vadd.f32 %v466, %v763
        %v765 = vpop.f32.mrb[0].mxu0
        %v766 = vpop.f32.mrb[0].mxu0
        %v767 = vadd.f32 %v466, %v766
        %v768 = vpop.f32.mrb[0].mxu0
        %769 = vdwg.mxu0
        %v770 = vmul.f32 %v644, %v393
        %v771 = vmul.f32 %v647, %v394
        %v772 = vmul.f32 %v652, %v395
        %v773 = vmul.f32 %v655, %v396
        %v774 = vmul.f32 %v660, %v397
        %v775 = vmul.f32 %v663, %v398
        %v776 = vmul.f32 %v668, %v399
        %v777 = vmul.f32 %v671, %v400
        %v778 = vmul.f32 %v676, %v401
        %v779 = vmul.f32 %v679, %v402
        %v780 = vmul.f32 %v684, %v403
        %v781 = vmul.f32 %v687, %v404
        %v782 = vmul.f32 %v692, %v405
        %v783 = vmul.f32 %v695, %v406
        %v784 = vmul.f32 %v700, %v407
        %v785 = vmul.f32 %v703, %v408
        %v786 = vmul.f32 %v708, %v409
        %v787 = vmul.f32 %v711, %v410
        %v788 = vmul.f32 %v716, %v411
        %v789 = vmul.f32 %v719, %v412
        %v790 = vmul.f32 %v724, %v413
        %v791 = vmul.f32 %v727, %v414
        %v792 = vmul.f32 %v732, %v415
        %v793 = vmul.f32 %v735, %v416
        %v794 = vmul.f32 %v740, %v417
        %v795 = vmul.f32 %v743, %v418
        %v796 = vmul.f32 %v748, %v419
        %v797 = vmul.f32 %v751, %v420
        %v798 = vmul.f32 %v756, %v421
        %v799 = vmul.f32 %v759, %v422
        %v800 = vmul.f32 %v764, %v423
        %v801 = vmul.f32 %v767, %v424
        %834 = vrot.lane.b32.xlu0 %v425, 16
        %v835 = vpop.permute.xlu0 %834
        %836 = vrot.lane.b32.xlu0 %v426, 16
        %v837 = vpop.permute.xlu0 %836
        %838 = vrot.lane.b32.xlu0 %v427, 16
        %v839 = vpop.permute.xlu0 %838
        %840 = vrot.lane.b32.xlu0 %v428, 16
        %v841 = vpop.permute.xlu0 %840
        %842 = vrot.lane.b32.xlu0 %v429, 16
        %v843 = vpop.permute.xlu0 %842
        %844 = vrot.lane.b32.xlu0 %v430, 16
        %v845 = vpop.permute.xlu0 %844
        %846 = vrot.lane.b32.xlu0 %v431, 16
        %v847 = vpop.permute.xlu0 %846
        %848 = vrot.lane.b32.xlu0 %v432, 16
        %v849 = vpop.permute.xlu0 %848
        %850 = vrot.lane.b32.xlu0 %v433, 16
        %v851 = vpop.permute.xlu0 %850
        %852 = vrot.lane.b32.xlu0 %v434, 16
        %v853 = vpop.permute.xlu0 %852
        %854 = vrot.lane.b32.xlu0 %v435, 16
        %v855 = vpop.permute.xlu0 %854
        %856 = vrot.lane.b32.xlu0 %v436, 16
        %v857 = vpop.permute.xlu0 %856
        %858 = vrot.lane.b32.xlu0 %v437, 16
        %v859 = vpop.permute.xlu0 %858
        %860 = vrot.lane.b32.xlu0 %v438, 16
        %v861 = vpop.permute.xlu0 %860
        %862 = vrot.lane.b32.xlu0 %v439, 16
        %v863 = vpop.permute.xlu0 %862
        %864 = vrot.lane.b32.xlu0 %v440, 16
        %v865 = vpop.permute.xlu0 %864
        %866 = vrot.lane.b32.xlu0 %v441, 16
        %v867 = vpop.permute.xlu0 %866
        %868 = vrot.lane.b32.xlu0 %v442, 16
        %v869 = vpop.permute.xlu0 %868
        %870 = vrot.lane.b32.xlu0 %v443, 16
        %v871 = vpop.permute.xlu0 %870
        %872 = vrot.lane.b32.xlu0 %v444, 16
        %v873 = vpop.permute.xlu0 %872
        %874 = vrot.lane.b32.xlu0 %v445, 16
        %v875 = vpop.permute.xlu0 %874
        %876 = vrot.lane.b32.xlu0 %v446, 16
        %v877 = vpop.permute.xlu0 %876
        %878 = vrot.lane.b32.xlu0 %v447, 16
        %v879 = vpop.permute.xlu0 %878
        %880 = vrot.lane.b32.xlu0 %v448, 16
        %v881 = vpop.permute.xlu0 %880
        %882 = vrot.lane.b32.xlu0 %v449, 16
        %v883 = vpop.permute.xlu0 %882
        %884 = vrot.lane.b32.xlu0 %v450, 16
        %v885 = vpop.permute.xlu0 %884
        %886 = vrot.lane.b32.xlu0 %v451, 16
        %v887 = vpop.permute.xlu0 %886
        %888 = vrot.lane.b32.xlu0 %v452, 16
        %v889 = vpop.permute.xlu0 %888
        %890 = vrot.lane.b32.xlu0 %v453, 16
        %v891 = vpop.permute.xlu0 %890
        %892 = vrot.lane.b32.xlu0 %v454, 16
        %v893 = vpop.permute.xlu0 %892
        %894 = vrot.lane.b32.xlu0 %v455, 16
        %v895 = vpop.permute.xlu0 %894
        %896 = vrot.lane.b32.xlu0 %v456, 16
        %v897 = vpop.permute.xlu0 %896
        %v930 = vmul.f32 %v644, %v835
        %v931 = vmul.f32 %v647, %v837
        %v932 = vmul.f32 %v652, %v839
        %v933 = vmul.f32 %v655, %v841
        %v934 = vmul.f32 %v660, %v843
        %v935 = vmul.f32 %v663, %v845
        %v936 = vmul.f32 %v668, %v847
        %v937 = vmul.f32 %v671, %v849
        %v938 = vmul.f32 %v676, %v851
        %v939 = vmul.f32 %v679, %v853
        %v940 = vmul.f32 %v684, %v855
        %v941 = vmul.f32 %v687, %v857
        %v942 = vmul.f32 %v692, %v859
        %v943 = vmul.f32 %v695, %v861
        %v944 = vmul.f32 %v700, %v863
        %v945 = vmul.f32 %v703, %v865
        %v946 = vmul.f32 %v708, %v867
        %v947 = vmul.f32 %v711, %v869
        %v948 = vmul.f32 %v716, %v871
        %v949 = vmul.f32 %v719, %v873
        %v950 = vmul.f32 %v724, %v875
        %v951 = vmul.f32 %v727, %v877
        %v952 = vmul.f32 %v732, %v879
        %v953 = vmul.f32 %v735, %v881
        %v954 = vmul.f32 %v740, %v883
        %v955 = vmul.f32 %v743, %v885
        %v956 = vmul.f32 %v748, %v887
        %v957 = vmul.f32 %v751, %v889
        %v958 = vmul.f32 %v756, %v891
        %v959 = vmul.f32 %v759, %v893
        %v960 = vmul.f32 %v764, %v895
        %v961 = vmul.f32 %v767, %v897
        %994 = vrot.lane.b32.xlu0 %v930, 112
        %v995 = vpop.permute.xlu0 %994
        %996 = vrot.lane.b32.xlu0 %v931, 112
        %v997 = vpop.permute.xlu0 %996
        %998 = vrot.lane.b32.xlu0 %v932, 112
        %v999 = vpop.permute.xlu0 %998
        %1000 = vrot.lane.b32.xlu0 %v933, 112
        %v1001 = vpop.permute.xlu0 %1000
        %1002 = vrot.lane.b32.xlu0 %v934, 112
        %v1003 = vpop.permute.xlu0 %1002
        %1004 = vrot.lane.b32.xlu0 %v935, 112
        %v1005 = vpop.permute.xlu0 %1004
        %1006 = vrot.lane.b32.xlu0 %v936, 112
        %v1007 = vpop.permute.xlu0 %1006
        %1008 = vrot.lane.b32.xlu0 %v937, 112
        %v1009 = vpop.permute.xlu0 %1008
        %1010 = vrot.lane.b32.xlu0 %v938, 112
        %v1011 = vpop.permute.xlu0 %1010
        %1012 = vrot.lane.b32.xlu0 %v939, 112
        %v1013 = vpop.permute.xlu0 %1012
        %1014 = vrot.lane.b32.xlu0 %v940, 112
        %v1015 = vpop.permute.xlu0 %1014
        %1016 = vrot.lane.b32.xlu0 %v941, 112
        %v1017 = vpop.permute.xlu0 %1016
        %1018 = vrot.lane.b32.xlu0 %v942, 112
        %v1019 = vpop.permute.xlu0 %1018
        %1020 = vrot.lane.b32.xlu0 %v943, 112
        %v1021 = vpop.permute.xlu0 %1020
        %1022 = vrot.lane.b32.xlu0 %v944, 112
        %v1023 = vpop.permute.xlu0 %1022
        %1024 = vrot.lane.b32.xlu0 %v945, 112
        %v1025 = vpop.permute.xlu0 %1024
        %1026 = vrot.lane.b32.xlu0 %v946, 112
        %v1027 = vpop.permute.xlu0 %1026
        %1028 = vrot.lane.b32.xlu0 %v947, 112
        %v1029 = vpop.permute.xlu0 %1028
        %1030 = vrot.lane.b32.xlu0 %v948, 112
        %v1031 = vpop.permute.xlu0 %1030
        %1032 = vrot.lane.b32.xlu0 %v949, 112
        %v1033 = vpop.permute.xlu0 %1032
        %1034 = vrot.lane.b32.xlu0 %v950, 112
        %v1035 = vpop.permute.xlu0 %1034
        %1036 = vrot.lane.b32.xlu0 %v951, 112
        %v1037 = vpop.permute.xlu0 %1036
        %1038 = vrot.lane.b32.xlu0 %v952, 112
        %v1039 = vpop.permute.xlu0 %1038
        %1040 = vrot.lane.b32.xlu0 %v953, 112
        %v1041 = vpop.permute.xlu0 %1040
        %1042 = vrot.lane.b32.xlu0 %v954, 112
        %v1043 = vpop.permute.xlu0 %1042
        %1044 = vrot.lane.b32.xlu0 %v955, 112
        %v1045 = vpop.permute.xlu0 %1044
        %1046 = vrot.lane.b32.xlu0 %v956, 112
        %v1047 = vpop.permute.xlu0 %1046
        %1048 = vrot.lane.b32.xlu0 %v957, 112
        %v1049 = vpop.permute.xlu0 %1048
        %1050 = vrot.lane.b32.xlu0 %v958, 112
        %v1051 = vpop.permute.xlu0 %1050
        %1052 = vrot.lane.b32.xlu0 %v959, 112
        %v1053 = vpop.permute.xlu0 %1052
        %1054 = vrot.lane.b32.xlu0 %v960, 112
        %v1055 = vpop.permute.xlu0 %1054
        %1056 = vrot.lane.b32.xlu0 %v961, 112
        %v1057 = vpop.permute.xlu0 %1056
        %v1090 = vadd.f32 %v770, %v995
        %v1091 = vadd.f32 %v771, %v997
        %v1092 = vadd.f32 %v772, %v999
        %v1093 = vadd.f32 %v773, %v1001
        %v1094 = vadd.f32 %v774, %v1003
        %v1095 = vadd.f32 %v775, %v1005
        %v1096 = vadd.f32 %v776, %v1007
        %v1097 = vadd.f32 %v777, %v1009
        %v1098 = vadd.f32 %v778, %v1011
        %v1099 = vadd.f32 %v779, %v1013
        %v1100 = vadd.f32 %v780, %v1015
        %v1101 = vadd.f32 %v781, %v1017
        %v1102 = vadd.f32 %v782, %v1019
        %v1103 = vadd.f32 %v783, %v1021
        %v1104 = vadd.f32 %v784, %v1023
        %v1105 = vadd.f32 %v785, %v1025
        %v1106 = vadd.f32 %v786, %v1027
        %v1107 = vadd.f32 %v787, %v1029
        %v1108 = vadd.f32 %v788, %v1031
        %v1109 = vadd.f32 %v789, %v1033
        %v1110 = vadd.f32 %v790, %v1035
        %v1111 = vadd.f32 %v791, %v1037
        %v1112 = vadd.f32 %v792, %v1039
        %v1113 = vadd.f32 %v793, %v1041
        %v1114 = vadd.f32 %v794, %v1043
        %v1115 = vadd.f32 %v795, %v1045
        %v1116 = vadd.f32 %v796, %v1047
        %v1117 = vadd.f32 %v797, %v1049
        %v1118 = vadd.f32 %v798, %v1051
        %v1119 = vadd.f32 %v799, %v1053
        %v1120 = vadd.f32 %v800, %v1055
        %v1121 = vadd.f32 %v801, %v1057
        %v1122 = vpack.c.bf16 %v1091, %v1090
        %v1123 = vpack.c.bf16 %v1093, %v1092
        %v1124 = vpack.c.bf16 %v1095, %v1094
        %v1125 = vpack.c.bf16 %v1097, %v1096
        %v1126 = vpack.c.bf16 %v1099, %v1098
        %v1127 = vpack.c.bf16 %v1101, %v1100
        %v1128 = vpack.c.bf16 %v1103, %v1102
        %v1129 = vpack.c.bf16 %v1105, %v1104
        %v1130 = vpack.c.bf16 %v1107, %v1106
        %v1131 = vpack.c.bf16 %v1109, %v1108
        %v1132 = vpack.c.bf16 %v1111, %v1110
        %v1133 = vpack.c.bf16 %v1113, %v1112
        %v1134 = vpack.c.bf16 %v1115, %v1114
        %v1135 = vpack.c.bf16 %v1117, %v1116
        %v1136 = vpack.c.bf16 %v1119, %v1118
        %v1137 = vpack.c.bf16 %v1121, %v1120
        %vm1138 = vcmask 130048
        %1139 = vst.msk [vmem:[#allocation2] sm:$0xff] %vm1138, %v1122
        %1140 = vst.msk [vmem:[#allocation2 + $0x8] sm:$0xff] %vm1138, %v1123
        %1141 = vst.msk [vmem:[#allocation2 + $0x10] sm:$0xff] %vm1138, %v1124
        %1142 = vst.msk [vmem:[#allocation2 + $0x18] sm:$0xff] %vm1138, %v1125
        %1143 = vst.msk [vmem:[#allocation2 + $0x20] sm:$0xff] %vm1138, %v1126
        %1144 = vst.msk [vmem:[#allocation2 + $0x28] sm:$0xff] %vm1138, %v1127
        %1145 = vst.msk [vmem:[#allocation2 + $0x30] sm:$0xff] %vm1138, %v1128
        %1146 = vst.msk [vmem:[#allocation2 + $0x38] sm:$0xff] %vm1138, %v1129
        %1147 = vst.msk [vmem:[#allocation2 + $0x40] sm:$0xff] %vm1138, %v1130
        %1148 = vst.msk [vmem:[#allocation2 + $0x48] sm:$0xff] %vm1138, %v1131
        %1149 = vst.msk [vmem:[#allocation2 + $0x50] sm:$0xff] %vm1138, %v1132
        %1150 = vst.msk [vmem:[#allocation2 + $0x58] sm:$0xff] %vm1138, %v1133
        %1151 = vst.msk [vmem:[#allocation2 + $0x60] sm:$0xff] %vm1138, %v1134
        %1152 = vst.msk [vmem:[#allocation2 + $0x68] sm:$0xff] %vm1138, %v1135
        %1153 = vst.msk [vmem:[#allocation2 + $0x70] sm:$0xff] %vm1138, %v1136
        %1154 = vst.msk [vmem:[#allocation2 + $0x78] sm:$0xff] %vm1138, %v1137
        %v1155 = vpack.c.bf16 %v647, %v644
        %v1156 = vpack.c.bf16 %v655, %v652
        %v1157 = vpack.c.bf16 %v663, %v660
        %v1158 = vpack.c.bf16 %v671, %v668
        %v1159 = vpack.c.bf16 %v679, %v676
        %v1160 = vpack.c.bf16 %v687, %v684
        %v1161 = vpack.c.bf16 %v695, %v692
        %v1162 = vpack.c.bf16 %v703, %v700
        %v1163 = vpack.c.bf16 %v711, %v708
        %v1164 = vpack.c.bf16 %v719, %v716
        %v1165 = vpack.c.bf16 %v727, %v724
        %v1166 = vpack.c.bf16 %v735, %v732
        %v1167 = vpack.c.bf16 %v743, %v740
        %v1168 = vpack.c.bf16 %v751, %v748
        %v1169 = vpack.c.bf16 %v759, %v756
        %v1170 = vpack.c.bf16 %v767, %v764
        %1187 = vrot.lane.b32.xlu0 %v1155, 96
        %v1188 = vpop.permute.xlu0 %1187
        %1189 = vrot.lane.b32.xlu0 %v1156, 96
        %v1190 = vpop.permute.xlu0 %1189
        %1191 = vrot.lane.b32.xlu0 %v1157, 96
        %v1192 = vpop.permute.xlu0 %1191
        %1193 = vrot.lane.b32.xlu0 %v1158, 96
        %v1194 = vpop.permute.xlu0 %1193
        %1195 = vrot.lane.b32.xlu0 %v1159, 96
        %v1196 = vpop.permute.xlu0 %1195
        %1197 = vrot.lane.b32.xlu0 %v1160, 96
        %v1198 = vpop.permute.xlu0 %1197
        %1199 = vrot.lane.b32.xlu0 %v1161, 96
        %v1200 = vpop.permute.xlu0 %1199
        %1201 = vrot.lane.b32.xlu0 %v1162, 96
        %v1202 = vpop.permute.xlu0 %1201
        %1203 = vrot.lane.b32.xlu0 %v1163, 96
        %v1204 = vpop.permute.xlu0 %1203
        %1205 = vrot.lane.b32.xlu0 %v1164, 96
        %v1206 = vpop.permute.xlu0 %1205
        %1207 = vrot.lane.b32.xlu0 %v1165, 96
        %v1208 = vpop.permute.xlu0 %1207
        %1209 = vrot.lane.b32.xlu0 %v1166, 96
        %v1210 = vpop.permute.xlu0 %1209
        %1211 = vrot.lane.b32.xlu0 %v1167, 96
        %v1212 = vpop.permute.xlu0 %1211
        %1213 = vrot.lane.b32.xlu0 %v1168, 96
        %v1214 = vpop.permute.xlu0 %1213
        %1215 = vrot.lane.b32.xlu0 %v1169, 96
        %v1216 = vpop.permute.xlu0 %1215
        %1217 = vrot.lane.b32.xlu0 %v1170, 96
        %v1218 = vpop.permute.xlu0 %1217
        %1235 = vst.msk [vmem:[#allocation3] sm:$0xff] %vm1138, %v1188
        %1236 = vst.msk [vmem:[#allocation3 + $0x8] sm:$0xff] %vm1138, %v1190
        %1237 = vst.msk [vmem:[#allocation3 + $0x10] sm:$0xff] %vm1138, %v1192
        %1238 = vst.msk [vmem:[#allocation3 + $0x18] sm:$0xff] %vm1138, %v1194
        %1239 = vst.msk [vmem:[#allocation3 + $0x20] sm:$0xff] %vm1138, %v1196
        %1240 = vst.msk [vmem:[#allocation3 + $0x28] sm:$0xff] %vm1138, %v1198
        %1241 = vst.msk [vmem:[#allocation3 + $0x30] sm:$0xff] %vm1138, %v1200
        %1242 = vst.msk [vmem:[#allocation3 + $0x38] sm:$0xff] %vm1138, %v1202
        %1243 = vst.msk [vmem:[#allocation3 + $0x40] sm:$0xff] %vm1138, %v1204
        %1244 = vst.msk [vmem:[#allocation3 + $0x48] sm:$0xff] %vm1138, %v1206
        %1245 = vst.msk [vmem:[#allocation3 + $0x50] sm:$0xff] %vm1138, %v1208
        %1246 = vst.msk [vmem:[#allocation3 + $0x58] sm:$0xff] %vm1138, %v1210
        %1247 = vst.msk [vmem:[#allocation3 + $0x60] sm:$0xff] %vm1138, %v1212
        %1248 = vst.msk [vmem:[#allocation3 + $0x68] sm:$0xff] %vm1138, %v1214
        %1249 = vst.msk [vmem:[#allocation3 + $0x70] sm:$0xff] %vm1138, %v1216
        %1250 = vst.msk [vmem:[#allocation3 + $0x78] sm:$0xff] %vm1138, %v1218
        %s1251 = scalar_lea.vmem %s3, 16
        %v1252 = vld [vmem:[%s1251] sm:$0xf]
        %v1253 = vld [vmem:[%s1251 + $0x4] sm:$0xf]
        %v1254 = vld [vmem:[%s1251 + $0x8] sm:$0xf]
        %v1255 = vld [vmem:[%s1251 + $0xc] sm:$0xf]
        %s1256 = scalar_lea.vmem %s4, 1
        %v1257 = vld [vmem:[%s1256] sm:$0x1]
        %v1259 = vlaneseq
        %v1260 = vshrl.u32 %v1259, 7
        %v1261 = vsub.s32 0, %v1260
        %v1262 = vrot.slane %v1257, %v1261
        %v1268 = vunpack.c.l.b16 %v1252
        %v1269 = vunpack.c.l.b16 %v1253
        %v1270 = vunpack.c.l.b16 %v1254
        %v1271 = vunpack.c.l.b16 %v1255
        %v1272 = vpack.c.b16 %v1269, %v1268
        %v1273 = vpack.c.b16 %v1271, %v1270
        %1276 = vmatprep.subr.bf16.mxu0 0
        %1277 = vmatpush1.bf16.msra.mxu0 %v1272
        %1278 = vmatprep.subr.bf16.mxu0 0
        %1279 = vmatpush1.bf16.msra.mxu0 %v1273
        %1280 = vmatprep.subr.bf16.mxu0 0
        %1281 = vmatpush1.bf16.msra.mxu0 0
        %1282 = vmatprep.subr.bf16.mxu0 0
        %1283 = vmatpush1.bf16.msra.mxu0 0
        %1284 = vmatprep.subr.bf16.mxu0 0
        %1285 = vmatpush1.bf16.msra.mxu0 0
        %1286 = vmatprep.subr.bf16.mxu0 0
        %1287 = vmatpush1.bf16.msra.mxu0 0
        %1288 = vmatprep.subr.bf16.mxu0 0
        %1289 = vmatpush1.bf16.msra.mxu0 0
        %1290 = vmatprep.subr.bf16.mxu0 0
        %1291 = vmatpush1.bf16.msra.mxu0 0
        %1292 = vmatprep.subr.bf16.mxu0 0
        %1293 = vmatpush1.bf16.msra.mxu0 0
        %1294 = vmatprep.subr.bf16.mxu0 0
        %1295 = vmatpush1.bf16.msra.mxu0 0
        %1296 = vmatprep.subr.bf16.mxu0 0
        %1297 = vmatpush1.bf16.msra.mxu0 0
        %1298 = vmatprep.subr.bf16.mxu0 0
        %1299 = vmatpush1.bf16.msra.mxu0 0
        %1300 = vmatprep.subr.bf16.mxu0 0
        %1301 = vmatpush1.bf16.msra.mxu0 0
        %1302 = vmatprep.subr.bf16.mxu0 0
        %1303 = vmatpush1.bf16.msra.mxu0 0
        %1304 = vmatprep.subr.bf16.mxu0 0
        %1305 = vmatpush1.bf16.msra.mxu0 0
        %1306 = vmatprep.subr.bf16.mxu0 0
        %1307 = vmatpush1.bf16.msra.mxu0 0
        %1308 = vmatprep.mubr.bf16.mxu0 0
        %1309 = vmatmul.mubr.bf16.gmra.mrb[0].mxu0 %v562
        %v1310 = vpop.f32.mrb[0].mxu0
        %v1311 = vadd.f32 %v1262, %v1310
        %v1312 = vpop.f32.mrb[0].mxu0
        %v1313 = vpop.f32.mrb[0].mxu0
        %v1314 = vadd.f32 %v1262, %v1313
        %v1315 = vpop.f32.mrb[0].mxu0
        %1316 = vmatprep.mubr.bf16.mxu0 0
        %1317 = vmatmul.mubr.bf16.gmra.mrb[0].mxu0 %v565
        %v1318 = vpop.f32.mrb[0].mxu0
        %v1319 = vadd.f32 %v1262, %v1318
        %v1320 = vpop.f32.mrb[0].mxu0
        %v1321 = vpop.f32.mrb[0].mxu0
        %v1322 = vadd.f32 %v1262, %v1321
        %v1323 = vpop.f32.mrb[0].mxu0
        %1324 = vmatprep.mubr.bf16.mxu0 0
        %1325 = vmatmul.mubr.bf16.gmra.mrb[0].mxu0 %v568
        %v1326 = vpop.f32.mrb[0].mxu0
        %v1327 = vadd.f32 %v1262, %v1326
        %v1328 = vpop.f32.mrb[0].mxu0
        %v1329 = vpop.f32.mrb[0].mxu0
        %v1330 = vadd.f32 %v1262, %v1329
        %v1331 = vpop.f32.mrb[0].mxu0
        %1332 = vmatprep.mubr.bf16.mxu0 0
        %1333 = vmatmul.mubr.bf16.gmra.mrb[0].mxu0 %v571
        %v1334 = vpop.f32.mrb[0].mxu0
        %v1335 = vadd.f32 %v1262, %v1334
        %v1336 = vpop.f32.mrb[0].mxu0
        %v1337 = vpop.f32.mrb[0].mxu0
        %v1338 = vadd.f32 %v1262, %v1337
        %v1339 = vpop.f32.mrb[0].mxu0
        %1340 = vmatprep.mubr.bf16.mxu0 0
        %1341 = vmatmul.mubr.bf16.gmra.mrb[0].mxu0 %v574
        %v1342 = vpop.f32.mrb[0].mxu0
        %v1343 = vadd.f32 %v1262, %v1342
        %v1344 = vpop.f32.mrb[0].mxu0
        %v1345 = vpop.f32.mrb[0].mxu0
        %v1346 = vadd.f32 %v1262, %v1345
        %v1347 = vpop.f32.mrb[0].mxu0
        %1348 = vmatprep.mubr.bf16.mxu0 0
        %1349 = vmatmul.mubr.bf16.gmra.mrb[0].mxu0 %v577
        %v1350 = vpop.f32.mrb[0].mxu0
        %v1351 = vadd.f32 %v1262, %v1350
        %v1352 = vpop.f32.mrb[0].mxu0
        %v1353 = vpop.f32.mrb[0].mxu0
        %v1354 = vadd.f32 %v1262, %v1353
        %v1355 = vpop.f32.mrb[0].mxu0
        %1356 = vmatprep.mubr.bf16.mxu0 0
        %1357 = vmatmul.mubr.bf16.gmra.mrb[0].mxu0 %v580
        %v1358 = vpop.f32.mrb[0].mxu0
        %v1359 = vadd.f32 %v1262, %v1358
        %v1360 = vpop.f32.mrb[0].mxu0
        %v1361 = vpop.f32.mrb[0].mxu0
        %v1362 = vadd.f32 %v1262, %v1361
        %v1363 = vpop.f32.mrb[0].mxu0
        %1364 = vmatprep.mubr.bf16.mxu0 0
        %1365 = vmatmul.mubr.bf16.gmra.mrb[0].mxu0 %v583
        %v1366 = vpop.f32.mrb[0].mxu0
        %v1367 = vadd.f32 %v1262, %v1366
        %v1368 = vpop.f32.mrb[0].mxu0
        %v1369 = vpop.f32.mrb[0].mxu0
        %v1370 = vadd.f32 %v1262, %v1369
        %v1371 = vpop.f32.mrb[0].mxu0
        %1372 = vmatprep.mubr.bf16.mxu0 0
        %1373 = vmatmul.mubr.bf16.gmra.mrb[0].mxu0 %v586
        %v1374 = vpop.f32.mrb[0].mxu0
        %v1375 = vadd.f32 %v1262, %v1374
        %v1376 = vpop.f32.mrb[0].mxu0
        %v1377 = vpop.f32.mrb[0].mxu0
        %v1378 = vadd.f32 %v1262, %v1377
        %v1379 = vpop.f32.mrb[0].mxu0
        %1380 = vmatprep.mubr.bf16.mxu0 0
        %1381 = vmatmul.mubr.bf16.gmra.mrb[0].mxu0 %v589
        %v1382 = vpop.f32.mrb[0].mxu0
        %v1383 = vadd.f32 %v1262, %v1382
        %v1384 = vpop.f32.mrb[0].mxu0
        %v1385 = vpop.f32.mrb[0].mxu0
        %v1386 = vadd.f32 %v1262, %v1385
        %v1387 = vpop.f32.mrb[0].mxu0
        %1388 = vmatprep.mubr.bf16.mxu0 0
        %1389 = vmatmul.mubr.bf16.gmra.mrb[0].mxu0 %v592
        %v1390 = vpop.f32.mrb[0].mxu0
        %v1391 = vadd.f32 %v1262, %v1390
        %v1392 = vpop.f32.mrb[0].mxu0
        %v1393 = vpop.f32.mrb[0].mxu0
        %v1394 = vadd.f32 %v1262, %v1393
        %v1395 = vpop.f32.mrb[0].mxu0
        %1396 = vmatprep.mubr.bf16.mxu0 0
        %1397 = vmatmul.mubr.bf16.gmra.mrb[0].mxu0 %v595
        %v1398 = vpop.f32.mrb[0].mxu0
        %v1399 = vadd.f32 %v1262, %v1398
        %v1400 = vpop.f32.mrb[0].mxu0
        %v1401 = vpop.f32.mrb[0].mxu0
        %v1402 = vadd.f32 %v1262, %v1401
        %v1403 = vpop.f32.mrb[0].mxu0
        %1404 = vmatprep.mubr.bf16.mxu0 0
        %1405 = vmatmul.mubr.bf16.gmra.mrb[0].mxu0 %v598
        %v1406 = vpop.f32.mrb[0].mxu0
        %v1407 = vadd.f32 %v1262, %v1406
        %v1408 = vpop.f32.mrb[0].mxu0
        %v1409 = vpop.f32.mrb[0].mxu0
        %v1410 = vadd.f32 %v1262, %v1409
        %v1411 = vpop.f32.mrb[0].mxu0
        %1412 = vmatprep.mubr.bf16.mxu0 0
        %1413 = vmatmul.mubr.bf16.gmra.mrb[0].mxu0 %v601
        %v1414 = vpop.f32.mrb[0].mxu0
        %v1415 = vadd.f32 %v1262, %v1414
        %v1416 = vpop.f32.mrb[0].mxu0
        %v1417 = vpop.f32.mrb[0].mxu0
        %v1418 = vadd.f32 %v1262, %v1417
        %v1419 = vpop.f32.mrb[0].mxu0
        %1420 = vmatprep.mubr.bf16.mxu0 0
        %1421 = vmatmul.mubr.bf16.gmra.mrb[0].mxu0 %v604
        %v1422 = vpop.f32.mrb[0].mxu0
        %v1423 = vadd.f32 %v1262, %v1422
        %v1424 = vpop.f32.mrb[0].mxu0
        %v1425 = vpop.f32.mrb[0].mxu0
        %v1426 = vadd.f32 %v1262, %v1425
        %v1427 = vpop.f32.mrb[0].mxu0
        %1428 = vmatprep.mubr.bf16.mxu0 0
        %1429 = vmatmul.mubr.bf16.gmra.mrb[0].mxu0 %v607
        %v1430 = vpop.f32.mrb[0].mxu0
        %v1431 = vadd.f32 %v1262, %v1430
        %v1432 = vpop.f32.mrb[0].mxu0
        %v1433 = vpop.f32.mrb[0].mxu0
        %v1434 = vadd.f32 %v1262, %v1433
        %v1435 = vpop.f32.mrb[0].mxu0
        %1436 = vdwg.mxu0
        %v1437 = vmul.f32 %v1311, %v393
        %v1438 = vmul.f32 %v1314, %v394
        %v1439 = vmul.f32 %v1319, %v395
        %v1440 = vmul.f32 %v1322, %v396
        %v1441 = vmul.f32 %v1327, %v397
        %v1442 = vmul.f32 %v1330, %v398
        %v1443 = vmul.f32 %v1335, %v399
        %v1444 = vmul.f32 %v1338, %v400
        %v1445 = vmul.f32 %v1343, %v401
        %v1446 = vmul.f32 %v1346, %v402
        %v1447 = vmul.f32 %v1351, %v403
        %v1448 = vmul.f32 %v1354, %v404
        %v1449 = vmul.f32 %v1359, %v405
        %v1450 = vmul.f32 %v1362, %v406
        %v1451 = vmul.f32 %v1367, %v407
        %v1452 = vmul.f32 %v1370, %v408
        %v1453 = vmul.f32 %v1375, %v409
        %v1454 = vmul.f32 %v1378, %v410
        %v1455 = vmul.f32 %v1383, %v411
        %v1456 = vmul.f32 %v1386, %v412
        %v1457 = vmul.f32 %v1391, %v413
        %v1458 = vmul.f32 %v1394, %v414
        %v1459 = vmul.f32 %v1399, %v415
        %v1460 = vmul.f32 %v1402, %v416
        %v1461 = vmul.f32 %v1407, %v417
        %v1462 = vmul.f32 %v1410, %v418
        %v1463 = vmul.f32 %v1415, %v419
        %v1464 = vmul.f32 %v1418, %v420
        %v1465 = vmul.f32 %v1423, %v421
        %v1466 = vmul.f32 %v1426, %v422
        %v1467 = vmul.f32 %v1431, %v423
        %v1468 = vmul.f32 %v1434, %v424
        %v1469 = vmul.f32 %v1311, %v835
        %v1470 = vmul.f32 %v1314, %v837
        %v1471 = vmul.f32 %v1319, %v839
        %v1472 = vmul.f32 %v1322, %v841
        %v1473 = vmul.f32 %v1327, %v843
        %v1474 = vmul.f32 %v1330, %v845
        %v1475 = vmul.f32 %v1335, %v847
        %v1476 = vmul.f32 %v1338, %v849
        %v1477 = vmul.f32 %v1343, %v851
        %v1478 = vmul.f32 %v1346, %v853
        %v1479 = vmul.f32 %v1351, %v855
        %v1480 = vmul.f32 %v1354, %v857
        %v1481 = vmul.f32 %v1359, %v859
        %v1482 = vmul.f32 %v1362, %v861
        %v1483 = vmul.f32 %v1367, %v863
        %v1484 = vmul.f32 %v1370, %v865
        %v1485 = vmul.f32 %v1375, %v867
        %v1486 = vmul.f32 %v1378, %v869
        %v1487 = vmul.f32 %v1383, %v871
        %v1488 = vmul.f32 %v1386, %v873
        %v1489 = vmul.f32 %v1391, %v875
        %v1490 = vmul.f32 %v1394, %v877
        %v1491 = vmul.f32 %v1399, %v879
        %v1492 = vmul.f32 %v1402, %v881
        %v1493 = vmul.f32 %v1407, %v883
        %v1494 = vmul.f32 %v1410, %v885
        %v1495 = vmul.f32 %v1415, %v887
        %v1496 = vmul.f32 %v1418, %v889
        %v1497 = vmul.f32 %v1423, %v891
        %v1498 = vmul.f32 %v1426, %v893
        %v1499 = vmul.f32 %v1431, %v895
        %v1500 = vmul.f32 %v1434, %v897
        %1533 = vrot.lane.b32.xlu0 %v1469, 112
        %v1534 = vpop.permute.xlu0 %1533
        %1535 = vrot.lane.b32.xlu0 %v1470, 112
        %v1536 = vpop.permute.xlu0 %1535
        %1537 = vrot.lane.b32.xlu0 %v1471, 112
        %v1538 = vpop.permute.xlu0 %1537
        %1539 = vrot.lane.b32.xlu0 %v1472, 112
        %v1540 = vpop.permute.xlu0 %1539
        %1541 = vrot.lane.b32.xlu0 %v1473, 112
        %v1542 = vpop.permute.xlu0 %1541
        %1543 = vrot.lane.b32.xlu0 %v1474, 112
        %v1544 = vpop.permute.xlu0 %1543
        %1545 = vrot.lane.b32.xlu0 %v1475, 112
        %v1546 = vpop.permute.xlu0 %1545
        %1547 = vrot.lane.b32.xlu0 %v1476, 112
        %v1548 = vpop.permute.xlu0 %1547
        %1549 = vrot.lane.b32.xlu0 %v1477, 112
        %v1550 = vpop.permute.xlu0 %1549
        %1551 = vrot.lane.b32.xlu0 %v1478, 112
        %v1552 = vpop.permute.xlu0 %1551
        %1553 = vrot.lane.b32.xlu0 %v1479, 112
        %v1554 = vpop.permute.xlu0 %1553
        %1555 = vrot.lane.b32.xlu0 %v1480, 112
        %v1556 = vpop.permute.xlu0 %1555
        %1557 = vrot.lane.b32.xlu0 %v1481, 112
        %v1558 = vpop.permute.xlu0 %1557
        %1559 = vrot.lane.b32.xlu0 %v1482, 112
        %v1560 = vpop.permute.xlu0 %1559
        %1561 = vrot.lane.b32.xlu0 %v1483, 112
        %v1562 = vpop.permute.xlu0 %1561
        %1563 = vrot.lane.b32.xlu0 %v1484, 112
        %v1564 = vpop.permute.xlu0 %1563
        %1565 = vrot.lane.b32.xlu0 %v1485, 112
        %v1566 = vpop.permute.xlu0 %1565
        %1567 = vrot.lane.b32.xlu0 %v1486, 112
        %v1568 = vpop.permute.xlu0 %1567
        %1569 = vrot.lane.b32.xlu0 %v1487, 112
        %v1570 = vpop.permute.xlu0 %1569
        %1571 = vrot.lane.b32.xlu0 %v1488, 112
        %v1572 = vpop.permute.xlu0 %1571
        %1573 = vrot.lane.b32.xlu0 %v1489, 112
        %v1574 = vpop.permute.xlu0 %1573
        %1575 = vrot.lane.b32.xlu0 %v1490, 112
        %v1576 = vpop.permute.xlu0 %1575
        %1577 = vrot.lane.b32.xlu0 %v1491, 112
        %v1578 = vpop.permute.xlu0 %1577
        %1579 = vrot.lane.b32.xlu0 %v1492, 112
        %v1580 = vpop.permute.xlu0 %1579
        %1581 = vrot.lane.b32.xlu0 %v1493, 112
        %v1582 = vpop.permute.xlu0 %1581
        %1583 = vrot.lane.b32.xlu0 %v1494, 112
        %v1584 = vpop.permute.xlu0 %1583
        %1585 = vrot.lane.b32.xlu0 %v1495, 112
        %v1586 = vpop.permute.xlu0 %1585
        %1587 = vrot.lane.b32.xlu0 %v1496, 112
        %v1588 = vpop.permute.xlu0 %1587
        %1589 = vrot.lane.b32.xlu0 %v1497, 112
        %v1590 = vpop.permute.xlu0 %1589
        %1591 = vrot.lane.b32.xlu0 %v1498, 112
        %v1592 = vpop.permute.xlu0 %1591
        %1593 = vrot.lane.b32.xlu0 %v1499, 112
        %v1594 = vpop.permute.xlu0 %1593
        %1595 = vrot.lane.b32.xlu0 %v1500, 112
        %v1596 = vpop.permute.xlu0 %1595
        %v1629 = vadd.f32 %v1437, %v1534
        %v1630 = vadd.f32 %v1438, %v1536
        %v1631 = vadd.f32 %v1439, %v1538
        %v1632 = vadd.f32 %v1440, %v1540
        %v1633 = vadd.f32 %v1441, %v1542
        %v1634 = vadd.f32 %v1442, %v1544
        %v1635 = vadd.f32 %v1443, %v1546
        %v1636 = vadd.f32 %v1444, %v1548
        %v1637 = vadd.f32 %v1445, %v1550
        %v1638 = vadd.f32 %v1446, %v1552
        %v1639 = vadd.f32 %v1447, %v1554
        %v1640 = vadd.f32 %v1448, %v1556
        %v1641 = vadd.f32 %v1449, %v1558
        %v1642 = vadd.f32 %v1450, %v1560
        %v1643 = vadd.f32 %v1451, %v1562
        %v1644 = vadd.f32 %v1452, %v1564
        %v1645 = vadd.f32 %v1453, %v1566
        %v1646 = vadd.f32 %v1454, %v1568
        %v1647 = vadd.f32 %v1455, %v1570
        %v1648 = vadd.f32 %v1456, %v1572
        %v1649 = vadd.f32 %v1457, %v1574
        %v1650 = vadd.f32 %v1458, %v1576
        %v1651 = vadd.f32 %v1459, %v1578
        %v1652 = vadd.f32 %v1460, %v1580
        %v1653 = vadd.f32 %v1461, %v1582
        %v1654 = vadd.f32 %v1462, %v1584
        %v1655 = vadd.f32 %v1463, %v1586
        %v1656 = vadd.f32 %v1464, %v1588
        %v1657 = vadd.f32 %v1465, %v1590
        %v1658 = vadd.f32 %v1466, %v1592
        %v1659 = vadd.f32 %v1467, %v1594
        %v1660 = vadd.f32 %v1468, %v1596
        %v1661 = vpack.c.bf16 %v1630, %v1629
        %v1662 = vpack.c.bf16 %v1632, %v1631
        %v1663 = vpack.c.bf16 %v1634, %v1633
        %v1664 = vpack.c.bf16 %v1636, %v1635
        %v1665 = vpack.c.bf16 %v1638, %v1637
        %v1666 = vpack.c.bf16 %v1640, %v1639
        %v1667 = vpack.c.bf16 %v1642, %v1641
        %v1668 = vpack.c.bf16 %v1644, %v1643
        %v1669 = vpack.c.bf16 %v1646, %v1645
        %v1670 = vpack.c.bf16 %v1648, %v1647
        %v1671 = vpack.c.bf16 %v1650, %v1649
        %v1672 = vpack.c.bf16 %v1652, %v1651
        %v1673 = vpack.c.bf16 %v1654, %v1653
        %v1674 = vpack.c.bf16 %v1656, %v1655
        %v1675 = vpack.c.bf16 %v1658, %v1657
        %v1676 = vpack.c.bf16 %v1660, %v1659
        %s1677 = scalar_lea.vmem [#allocation2], 128
        %1678 = vst.msk [vmem:[%s1677] sm:$0xff] %vm1138, %v1661
        %1679 = vst.msk [vmem:[%s1677 + $0x8] sm:$0xff] %vm1138, %v1662
        %1680 = vst.msk [vmem:[%s1677 + $0x10] sm:$0xff] %vm1138, %v1663
        %1681 = vst.msk [vmem:[%s1677 + $0x18] sm:$0xff] %vm1138, %v1664
        %1682 = vst.msk [vmem:[%s1677 + $0x20] sm:$0xff] %vm1138, %v1665
        %1683 = vst.msk [vmem:[%s1677 + $0x28] sm:$0xff] %vm1138, %v1666
        %1684 = vst.msk [vmem:[%s1677 + $0x30] sm:$0xff] %vm1138, %v1667
        %1685 = vst.msk [vmem:[%s1677 + $0x38] sm:$0xff] %vm1138, %v1668
        %1686 = vst.msk [vmem:[%s1677 + $0x40] sm:$0xff] %vm1138, %v1669
        %1687 = vst.msk [vmem:[%s1677 + $0x48] sm:$0xff] %vm1138, %v1670
        %1688 = vst.msk [vmem:[%s1677 + $0x50] sm:$0xff] %vm1138, %v1671
        %1689 = vst.msk [vmem:[%s1677 + $0x58] sm:$0xff] %vm1138, %v1672
        %1690 = vst.msk [vmem:[%s1677 + $0x60] sm:$0xff] %vm1138, %v1673
        %1691 = vst.msk [vmem:[%s1677 + $0x68] sm:$0xff] %vm1138, %v1674
        %1692 = vst.msk [vmem:[%s1677 + $0x70] sm:$0xff] %vm1138, %v1675
        %1693 = vst.msk [vmem:[%s1677 + $0x78] sm:$0xff] %vm1138, %v1676
        %v1694 = vpack.c.bf16 %v1314, %v1311
        %v1695 = vpack.c.bf16 %v1322, %v1319
        %v1696 = vpack.c.bf16 %v1330, %v1327
        %v1697 = vpack.c.bf16 %v1338, %v1335
        %v1698 = vpack.c.bf16 %v1346, %v1343
        %v1699 = vpack.c.bf16 %v1354, %v1351
        %v1700 = vpack.c.bf16 %v1362, %v1359
        %v1701 = vpack.c.bf16 %v1370, %v1367
        %v1702 = vpack.c.bf16 %v1378, %v1375
        %v1703 = vpack.c.bf16 %v1386, %v1383
        %v1704 = vpack.c.bf16 %v1394, %v1391
        %v1705 = vpack.c.bf16 %v1402, %v1399
        %v1706 = vpack.c.bf16 %v1410, %v1407
        %v1707 = vpack.c.bf16 %v1418, %v1415
        %v1708 = vpack.c.bf16 %v1426, %v1423
        %v1709 = vpack.c.bf16 %v1434, %v1431
        %1726 = vrot.lane.b32.xlu0 %v1694, 96
        %v1727 = vpop.permute.xlu0 %1726
        %1728 = vrot.lane.b32.xlu0 %v1695, 96
        %v1729 = vpop.permute.xlu0 %1728
        %1730 = vrot.lane.b32.xlu0 %v1696, 96
        %v1731 = vpop.permute.xlu0 %1730
        %1732 = vrot.lane.b32.xlu0 %v1697, 96
        %v1733 = vpop.permute.xlu0 %1732
        %1734 = vrot.lane.b32.xlu0 %v1698, 96
        %v1735 = vpop.permute.xlu0 %1734
        %1736 = vrot.lane.b32.xlu0 %v1699, 96
        %v1737 = vpop.permute.xlu0 %1736
        %1738 = vrot.lane.b32.xlu0 %v1700, 96
        %v1739 = vpop.permute.xlu0 %1738
        %1740 = vrot.lane.b32.xlu0 %v1701, 96
        %v1741 = vpop.permute.xlu0 %1740
        %1742 = vrot.lane.b32.xlu0 %v1702, 96
        %v1743 = vpop.permute.xlu0 %1742
        %1744 = vrot.lane.b32.xlu0 %v1703, 96
        %v1745 = vpop.permute.xlu0 %1744
        %1746 = vrot.lane.b32.xlu0 %v1704, 96
        %v1747 = vpop.permute.xlu0 %1746
        %1748 = vrot.lane.b32.xlu0 %v1705, 96
        %v1749 = vpop.permute.xlu0 %1748
        %1750 = vrot.lane.b32.xlu0 %v1706, 96
        %v1751 = vpop.permute.xlu0 %1750
        %1752 = vrot.lane.b32.xlu0 %v1707, 96
        %v1753 = vpop.permute.xlu0 %1752
        %1754 = vrot.lane.b32.xlu0 %v1708, 96
        %v1755 = vpop.permute.xlu0 %1754
        %1756 = vrot.lane.b32.xlu0 %v1709, 96
        %v1757 = vpop.permute.xlu0 %1756
        %s1774 = scalar_lea.vmem [#allocation3], 128
        %1775 = vst.msk [vmem:[%s1774] sm:$0xff] %vm1138, %v1727
        %1776 = vst.msk [vmem:[%s1774 + $0x8] sm:$0xff] %vm1138, %v1729
        %1777 = vst.msk [vmem:[%s1774 + $0x10] sm:$0xff] %vm1138, %v1731
        %1778 = vst.msk [vmem:[%s1774 + $0x18] sm:$0xff] %vm1138, %v1733
        %1779 = vst.msk [vmem:[%s1774 + $0x20] sm:$0xff] %vm1138, %v1735
        %1780 = vst.msk [vmem:[%s1774 + $0x28] sm:$0xff] %vm1138, %v1737
        %1781 = vst.msk [vmem:[%s1774 + $0x30] sm:$0xff] %vm1138, %v1739
        %1782 = vst.msk [vmem:[%s1774 + $0x38] sm:$0xff] %vm1138, %v1741
        %1783 = vst.msk [vmem:[%s1774 + $0x40] sm:$0xff] %vm1138, %v1743
        %1784 = vst.msk [vmem:[%s1774 + $0x48] sm:$0xff] %vm1138, %v1745
        %1785 = vst.msk [vmem:[%s1774 + $0x50] sm:$0xff] %vm1138, %v1747
        %1786 = vst.msk [vmem:[%s1774 + $0x58] sm:$0xff] %vm1138, %v1749
        %1787 = vst.msk [vmem:[%s1774 + $0x60] sm:$0xff] %vm1138, %v1751
        %1788 = vst.msk [vmem:[%s1774 + $0x68] sm:$0xff] %vm1138, %v1753
        %1789 = vst.msk [vmem:[%s1774 + $0x70] sm:$0xff] %vm1138, %v1755
        %1790 = vst.msk [vmem:[%s1774 + $0x78] sm:$0xff] %vm1138, %v1757
      $region60: #{attention_forward.1} parent=55 // pred_fallthru
        _
      %s1791 = smul.u32 %s25, 128
      %s1792 = sshra.s32 %s1791, 3
      %s1793 = sand.u32 %s1791, 7
      %s1794 = smul.addr %s1792, 4
      %s1795 = scalar_lea.vmem %s345, %s1794
      %v1796 = vld [vmem:[%s1795] sm:$0xf]
      %v1797 = vld [vmem:[%s1795 + $0x4] sm:$0xf]
      %v1798 = vld [vmem:[%s1795 + $0x8] sm:$0xf]
      %v1799 = vld [vmem:[%s1795 + $0xc] sm:$0xf]
      %v1800 = vld [vmem:[%s1795 + $0x10] sm:$0xf]
      %v1801 = vld [vmem:[%s1795 + $0x14] sm:$0xf]
      %v1802 = vld [vmem:[%s1795 + $0x18] sm:$0xf]
      %v1803 = vld [vmem:[%s1795 + $0x1c] sm:$0xf]
      %v1804 = vld [vmem:[%s1795 + $0x20] sm:$0xf]
      %v1805 = vld [vmem:[%s1795 + $0x24] sm:$0xf]
      %v1806 = vld [vmem:[%s1795 + $0x28] sm:$0xf]
      %v1807 = vld [vmem:[%s1795 + $0x2c] sm:$0xf]
      %v1808 = vld [vmem:[%s1795 + $0x30] sm:$0xf]
      %v1809 = vld [vmem:[%s1795 + $0x34] sm:$0xf]
      %v1810 = vld [vmem:[%s1795 + $0x38] sm:$0xf]
      %v1811 = vld [vmem:[%s1795 + $0x3c] sm:$0xf]
      %s1812 = scalar_lea.vmem %s7, %s1791
      %v1813 = vld [vmem:[%s1812] sm:$0xff]
      %v1814 = vld [vmem:[%s1812 + $0x8] sm:$0xff]
      %v1815 = vld [vmem:[%s1812 + $0x10] sm:$0xff]
      %v1816 = vld [vmem:[%s1812 + $0x18] sm:$0xff]
      %v1817 = vld [vmem:[%s1812 + $0x20] sm:$0xff]
      %v1818 = vld [vmem:[%s1812 + $0x28] sm:$0xff]
      %v1819 = vld [vmem:[%s1812 + $0x30] sm:$0xff]
      %v1820 = vld [vmem:[%s1812 + $0x38] sm:$0xff]
      %v1821 = vld [vmem:[%s1812 + $0x40] sm:$0xff]
      %v1822 = vld [vmem:[%s1812 + $0x48] sm:$0xff]
      %v1823 = vld [vmem:[%s1812 + $0x50] sm:$0xff]
      %v1824 = vld [vmem:[%s1812 + $0x58] sm:$0xff]
      %v1825 = vld [vmem:[%s1812 + $0x60] sm:$0xff]
      %v1826 = vld [vmem:[%s1812 + $0x68] sm:$0xff]
      %v1827 = vld [vmem:[%s1812 + $0x70] sm:$0xff]
      %v1828 = vld [vmem:[%s1812 + $0x78] sm:$0xff]
      %s1829 = scalar_lea.vmem %s8, %s1791
      %v1830 = vld [vmem:[%s1829] sm:$0xff]
      %v1831 = vld [vmem:[%s1829 + $0x8] sm:$0xff]
      %v1832 = vld [vmem:[%s1829 + $0x10] sm:$0xff]
      %v1833 = vld [vmem:[%s1829 + $0x18] sm:$0xff]
      %v1834 = vld [vmem:[%s1829 + $0x20] sm:$0xff]
      %v1835 = vld [vmem:[%s1829 + $0x28] sm:$0xff]
      %v1836 = vld [vmem:[%s1829 + $0x30] sm:$0xff]
      %v1837 = vld [vmem:[%s1829 + $0x38] sm:$0xff]
      %v1838 = vld [vmem:[%s1829 + $0x40] sm:$0xff]
      %v1839 = vld [vmem:[%s1829 + $0x48] sm:$0xff]
      %v1840 = vld [vmem:[%s1829 + $0x50] sm:$0xff]
      %v1841 = vld [vmem:[%s1829 + $0x58] sm:$0xff]
      %v1842 = vld [vmem:[%s1829 + $0x60] sm:$0xff]
      %v1843 = vld [vmem:[%s1829 + $0x68] sm:$0xff]
      %v1844 = vld [vmem:[%s1829 + $0x70] sm:$0xff]
      %v1845 = vld [vmem:[%s1829 + $0x78] sm:$0xff]
      %v1846 = vlaneseq
      %v1847 = vand.u32 %v1846, 127
      %v1848 = vadd.s32 %v1847, 128
      %vm1849 = vcmp.lt.s32.totalorder %v1847, 197
      %vm1850 = vcmp.lt.s32.totalorder %v1848, 197
      %v1851 = vsel %vm1849, 0.0, -1e+30
      %v1852 = vsel %vm1850, 0.0, -1e+30
      loop: start=0, step=1, limit=2
      $region61: #{attention_forward.1} parent=55 // loop_pre_header
        _
      $region62: #{attention_forward.1} parent=55 // loop_header
        %s1854 = sphi 0, %s1858
        %p1855 = scmp.ge.s32.totalorder %s1854, 2
        %v1859 = vphi 0.0, %v2948
        %v1860 = vphi 0.0, %v2949
        %v1861 = vphi 0.0, %v2950
        %v1862 = vphi 0.0, %v2951
        %v1863 = vphi 0.0, %v2952
        %v1864 = vphi 0.0, %v2953
        %v1865 = vphi 0.0, %v2954
        %v1866 = vphi 0.0, %v2955
        %v1867 = vphi 0.0, %v2956
        %v1868 = vphi 0.0, %v2957
        %v1869 = vphi 0.0, %v2958
        %v1870 = vphi 0.0, %v2959
        %v1871 = vphi 0.0, %v2960
        %v1872 = vphi 0.0, %v2961
        %v1873 = vphi 0.0, %v2962
        %v1874 = vphi 0.0, %v2963
      $region63: #{attention_forward.1} parent=55 // loop_header_branch
        %1857 = sbr.rel (%p1855) target = $region67
      $region64: #{attention_forward.1} parent=55 // loop_body
        %s1875 = smul.u32 %s1854, 4
        %s1876 = smul.addr %s1875, 4
        %s1877 = scalar_lea.vmem %s1, %s1876
        %v1878 = vld [vmem:[%s1877] sm:$0xf]
        %v1879 = vld [vmem:[%s1877 + $0x4] sm:$0xf]
        %v1880 = vld [vmem:[%s1877 + $0x8] sm:$0xf]
        %v1881 = vld [vmem:[%s1877 + $0xc] sm:$0xf]
        %s1882 = scalar_lea.vmem %s2, %s1854
        %v1883 = vld [vmem:[%s1882] sm:$0x1]
        %v1885 = vlaneseq
        %v1886 = vshrl.u32 %v1885, 7
        %v1887 = vsub.s32 0, %v1886
        %v1888 = vrot.slane %v1883, %v1887
        %v1906 = vunpack.c.l.b16 %v1796
        %v1907 = vunpack.c.l.b16 %v1797
        %v1908 = vunpack.c.l.b16 %v1798
        %v1909 = vunpack.c.l.b16 %v1799
        %v1910 = vunpack.c.l.b16 %v1800
        %v1911 = vunpack.c.l.b16 %v1801
        %v1912 = vunpack.c.l.b16 %v1802
        %v1913 = vunpack.c.l.b16 %v1803
        %v1914 = vunpack.c.l.b16 %v1804
        %v1915 = vunpack.c.l.b16 %v1805
        %v1916 = vunpack.c.l.b16 %v1806
        %v1917 = vunpack.c.l.b16 %v1807
        %v1918 = vunpack.c.l.b16 %v1808
        %v1919 = vunpack.c.l.b16 %v1809
        %v1920 = vunpack.c.l.b16 %v1810
        %v1921 = vunpack.c.l.b16 %v1811
        %v1922 = vpack.c.b16 %v1907, %v1906
        %v1923 = vpack.c.b16 %v1909, %v1908
        %v1924 = vpack.c.b16 %v1911, %v1910
        %v1925 = vpack.c.b16 %v1913, %v1912
        %v1926 = vpack.c.b16 %v1915, %v1914
        %v1927 = vpack.c.b16 %v1917, %v1916
        %v1928 = vpack.c.b16 %v1919, %v1918
        %v1929 = vpack.c.b16 %v1921, %v1920
        %v1934 = vunpack.c.l.b16 %v1878
        %v1935 = vunpack.c.l.b16 %v1879
        %v1936 = vunpack.c.l.b16 %v1880
        %v1937 = vunpack.c.l.b16 %v1881
        %v1938 = vpack.c.b16 %v1935, %v1934
        %v1939 = vpack.c.b16 %v1937, %v1936
        %vm1942 = vcmask 261120
        %v1944 = vsel %vm1942, %v1922, 0
        %v1947 = vsel %vm1942, %v1923, 0
        %v1950 = vsel %vm1942, %v1924, 0
        %v1953 = vsel %vm1942, %v1925, 0
        %v1956 = vsel %vm1942, %v1926, 0
        %v1959 = vsel %vm1942, %v1927, 0
        %v1962 = vsel %vm1942, %v1928, 0
        %v1965 = vsel %vm1942, %v1929, 0
        %1967 = vmatprep.subr.bf16.mxu0 0
        %1968 = vmatpush1.bf16.msra.mxu0 %v1938
        %1969 = vmatprep.subr.bf16.mxu0 0
        %1970 = vmatpush1.bf16.msra.mxu0 %v1939
        %1971 = vmatprep.subr.bf16.mxu0 0
        %1972 = vmatpush1.bf16.msra.mxu0 0
        %1973 = vmatprep.subr.bf16.mxu0 0
        %1974 = vmatpush1.bf16.msra.mxu0 0
        %1975 = vmatprep.subr.bf16.mxu0 0
        %1976 = vmatpush1.bf16.msra.mxu0 0
        %1977 = vmatprep.subr.bf16.mxu0 0
        %1978 = vmatpush1.bf16.msra.mxu0 0
        %1979 = vmatprep.subr.bf16.mxu0 0
        %1980 = vmatpush1.bf16.msra.mxu0 0
        %1981 = vmatprep.subr.bf16.mxu0 0
        %1982 = vmatpush1.bf16.msra.mxu0 0
        %1983 = vmatprep.subr.bf16.mxu0 0
        %1984 = vmatpush1.bf16.msra.mxu0 0
        %1985 = vmatprep.subr.bf16.mxu0 0
        %1986 = vmatpush1.bf16.msra.mxu0 0
        %1987 = vmatprep.subr.bf16.mxu0 0
        %1988 = vmatpush1.bf16.msra.mxu0 0
        %1989 = vmatprep.subr.bf16.mxu0 0
        %1990 = vmatpush1.bf16.msra.mxu0 0
        %1991 = vmatprep.subr.bf16.mxu0 0
        %1992 = vmatpush1.bf16.msra.mxu0 0
        %1993 = vmatprep.subr.bf16.mxu0 0
        %1994 = vmatpush1.bf16.msra.mxu0 0
        %1995 = vmatprep.subr.bf16.mxu0 0
        %1996 = vmatpush1.bf16.msra.mxu0 0
        %1997 = vmatprep.subr.bf16.mxu0 0
        %1998 = vmatpush1.bf16.msra.mxu0 0
        %1999 = vmatprep.mubr.bf16.mxu0 0
        %2000 = vmatmul.mubr.bf16.gmra.mrb[0].mxu0 %v1944
        %v2001 = vpop.f32.mrb[0].mxu0
        %v2002 = vadd.f32 %v1888, %v2001
        %v2003 = vpop.f32.mrb[0].mxu0
        %v2004 = vpop.f32.mrb[0].mxu0
        %v2005 = vadd.f32 %v1888, %v2004
        %v2006 = vpop.f32.mrb[0].mxu0
        %2007 = vmatprep.mubr.bf16.mxu0 0
        %2008 = vmatmul.mubr.bf16.gmra.mrb[0].mxu0 %v1947
        %v2009 = vpop.f32.mrb[0].mxu0
        %v2010 = vadd.f32 %v1888, %v2009
        %v2011 = vpop.f32.mrb[0].mxu0
        %v2012 = vpop.f32.mrb[0].mxu0
        %v2013 = vadd.f32 %v1888, %v2012
        %v2014 = vpop.f32.mrb[0].mxu0
        %2015 = vmatprep.mubr.bf16.mxu0 0
        %2016 = vmatmul.mubr.bf16.gmra.mrb[0].mxu0 %v1950
        %v2017 = vpop.f32.mrb[0].mxu0
        %v2018 = vadd.f32 %v1888, %v2017
        %v2019 = vpop.f32.mrb[0].mxu0
        %v2020 = vpop.f32.mrb[0].mxu0
        %v2021 = vadd.f32 %v1888, %v2020
        %v2022 = vpop.f32.mrb[0].mxu0
        %2023 = vmatprep.mubr.bf16.mxu0 0
        %2024 = vmatmul.mubr.bf16.gmra.mrb[0].mxu0 %v1953
        %v2025 = vpop.f32.mrb[0].mxu0
        %v2026 = vadd.f32 %v1888, %v2025
        %v2027 = vpop.f32.mrb[0].mxu0
        %v2028 = vpop.f32.mrb[0].mxu0
        %v2029 = vadd.f32 %v1888, %v2028
        %v2030 = vpop.f32.mrb[0].mxu0
        %2031 = vmatprep.mubr.bf16.mxu0 0
        %2032 = vmatmul.mubr.bf16.gmra.mrb[0].mxu0 %v1956
        %v2033 = vpop.f32.mrb[0].mxu0
        %v2034 = vadd.f32 %v1888, %v2033
        %v2035 = vpop.f32.mrb[0].mxu0
        %v2036 = vpop.f32.mrb[0].mxu0
        %v2037 = vadd.f32 %v1888, %v2036
        %v2038 = vpop.f32.mrb[0].mxu0
        %2039 = vmatprep.mubr.bf16.mxu0 0
        %2040 = vmatmul.mubr.bf16.gmra.mrb[0].mxu0 %v1959
        %v2041 = vpop.f32.mrb[0].mxu0
        %v2042 = vadd.f32 %v1888, %v2041
        %v2043 = vpop.f32.mrb[0].mxu0
        %v2044 = vpop.f32.mrb[0].mxu0
        %v2045 = vadd.f32 %v1888, %v2044
        %v2046 = vpop.f32.mrb[0].mxu0
        %2047 = vmatprep.mubr.bf16.mxu0 0
        %2048 = vmatmul.mubr.bf16.gmra.mrb[0].mxu0 %v1962
        %v2049 = vpop.f32.mrb[0].mxu0
        %v2050 = vadd.f32 %v1888, %v2049
        %v2051 = vpop.f32.mrb[0].mxu0
        %v2052 = vpop.f32.mrb[0].mxu0
        %v2053 = vadd.f32 %v1888, %v2052
        %v2054 = vpop.f32.mrb[0].mxu0
        %2055 = vmatprep.mubr.bf16.mxu0 0
        %2056 = vmatmul.mubr.bf16.gmra.mrb[0].mxu0 %v1965
        %v2057 = vpop.f32.mrb[0].mxu0
        %v2058 = vadd.f32 %v1888, %v2057
        %v2059 = vpop.f32.mrb[0].mxu0
        %v2060 = vpop.f32.mrb[0].mxu0
        %v2061 = vadd.f32 %v1888, %v2060
        %v2062 = vpop.f32.mrb[0].mxu0
        %2063 = vdwg.mxu0
        %v2064 = vmul.f32 %v2002, %v1813
        %v2065 = vmul.f32 %v2005, %v1814
        %v2066 = vmul.f32 %v2010, %v1815
        %v2067 = vmul.f32 %v2013, %v1816
        %v2068 = vmul.f32 %v2018, %v1817
        %v2069 = vmul.f32 %v2021, %v1818
        %v2070 = vmul.f32 %v2026, %v1819
        %v2071 = vmul.f32 %v2029, %v1820
        %v2072 = vmul.f32 %v2034, %v1821
        %v2073 = vmul.f32 %v2037, %v1822
        %v2074 = vmul.f32 %v2042, %v1823
        %v2075 = vmul.f32 %v2045, %v1824
        %v2076 = vmul.f32 %v2050, %v1825
        %v2077 = vmul.f32 %v2053, %v1826
        %v2078 = vmul.f32 %v2058, %v1827
        %v2079 = vmul.f32 %v2061, %v1828
        %2096 = vrot.lane.b32.xlu0 %v1830, 16
        %v2097 = vpop.permute.xlu0 %2096
        %2098 = vrot.lane.b32.xlu0 %v1831, 16
        %v2099 = vpop.permute.xlu0 %2098
        %2100 = vrot.lane.b32.xlu0 %v1832, 16
        %v2101 = vpop.permute.xlu0 %2100
        %2102 = vrot.lane.b32.xlu0 %v1833, 16
        %v2103 = vpop.permute.xlu0 %2102
        %2104 = vrot.lane.b32.xlu0 %v1834, 16
        %v2105 = vpop.permute.xlu0 %2104
        %2106 = vrot.lane.b32.xlu0 %v1835, 16
        %v2107 = vpop.permute.xlu0 %2106
        %2108 = vrot.lane.b32.xlu0 %v1836, 16
        %v2109 = vpop.permute.xlu0 %2108
        %2110 = vrot.lane.b32.xlu0 %v1837, 16
        %v2111 = vpop.permute.xlu0 %2110
        %2112 = vrot.lane.b32.xlu0 %v1838, 16
        %v2113 = vpop.permute.xlu0 %2112
        %2114 = vrot.lane.b32.xlu0 %v1839, 16
        %v2115 = vpop.permute.xlu0 %2114
        %2116 = vrot.lane.b32.xlu0 %v1840, 16
        %v2117 = vpop.permute.xlu0 %2116
        %2118 = vrot.lane.b32.xlu0 %v1841, 16
        %v2119 = vpop.permute.xlu0 %2118
        %2120 = vrot.lane.b32.xlu0 %v1842, 16
        %v2121 = vpop.permute.xlu0 %2120
        %2122 = vrot.lane.b32.xlu0 %v1843, 16
        %v2123 = vpop.permute.xlu0 %2122
        %2124 = vrot.lane.b32.xlu0 %v1844, 16
        %v2125 = vpop.permute.xlu0 %2124
        %2126 = vrot.lane.b32.xlu0 %v1845, 16
        %v2127 = vpop.permute.xlu0 %2126
        %v2144 = vmul.f32 %v2002, %v2097
        %v2145 = vmul.f32 %v2005, %v2099
        %v2146 = vmul.f32 %v2010, %v2101
        %v2147 = vmul.f32 %v2013, %v2103
        %v2148 = vmul.f32 %v2018, %v2105
        %v2149 = vmul.f32 %v2021, %v2107
        %v2150 = vmul.f32 %v2026, %v2109
        %v2151 = vmul.f32 %v2029, %v2111
        %v2152 = vmul.f32 %v2034, %v2113
        %v2153 = vmul.f32 %v2037, %v2115
        %v2154 = vmul.f32 %v2042, %v2117
        %v2155 = vmul.f32 %v2045, %v2119
        %v2156 = vmul.f32 %v2050, %v2121
        %v2157 = vmul.f32 %v2053, %v2123
        %v2158 = vmul.f32 %v2058, %v2125
        %v2159 = vmul.f32 %v2061, %v2127
        %2176 = vrot.lane.b32.xlu0 %v2144, 112
        %v2177 = vpop.permute.xlu0 %2176
        %2178 = vrot.lane.b32.xlu0 %v2145, 112
        %v2179 = vpop.permute.xlu0 %2178
        %2180 = vrot.lane.b32.xlu0 %v2146, 112
        %v2181 = vpop.permute.xlu0 %2180
        %2182 = vrot.lane.b32.xlu0 %v2147, 112
        %v2183 = vpop.permute.xlu0 %2182
        %2184 = vrot.lane.b32.xlu0 %v2148, 112
        %v2185 = vpop.permute.xlu0 %2184
        %2186 = vrot.lane.b32.xlu0 %v2149, 112
        %v2187 = vpop.permute.xlu0 %2186
        %2188 = vrot.lane.b32.xlu0 %v2150, 112
        %v2189 = vpop.permute.xlu0 %2188
        %2190 = vrot.lane.b32.xlu0 %v2151, 112
        %v2191 = vpop.permute.xlu0 %2190
        %2192 = vrot.lane.b32.xlu0 %v2152, 112
        %v2193 = vpop.permute.xlu0 %2192
        %2194 = vrot.lane.b32.xlu0 %v2153, 112
        %v2195 = vpop.permute.xlu0 %2194
        %2196 = vrot.lane.b32.xlu0 %v2154, 112
        %v2197 = vpop.permute.xlu0 %2196
        %2198 = vrot.lane.b32.xlu0 %v2155, 112
        %v2199 = vpop.permute.xlu0 %2198
        %2200 = vrot.lane.b32.xlu0 %v2156, 112
        %v2201 = vpop.permute.xlu0 %2200
        %2202 = vrot.lane.b32.xlu0 %v2157, 112
        %v2203 = vpop.permute.xlu0 %2202
        %2204 = vrot.lane.b32.xlu0 %v2158, 112
        %v2205 = vpop.permute.xlu0 %2204
        %2206 = vrot.lane.b32.xlu0 %v2159, 112
        %v2207 = vpop.permute.xlu0 %2206
        %v2224 = vadd.f32 %v2064, %v2177
        %v2225 = vadd.f32 %v2065, %v2179
        %v2226 = vadd.f32 %v2066, %v2181
        %v2227 = vadd.f32 %v2067, %v2183
        %v2228 = vadd.f32 %v2068, %v2185
        %v2229 = vadd.f32 %v2069, %v2187
        %v2230 = vadd.f32 %v2070, %v2189
        %v2231 = vadd.f32 %v2071, %v2191
        %v2232 = vadd.f32 %v2072, %v2193
        %v2233 = vadd.f32 %v2073, %v2195
        %v2234 = vadd.f32 %v2074, %v2197
        %v2235 = vadd.f32 %v2075, %v2199
        %v2236 = vadd.f32 %v2076, %v2201
        %v2237 = vadd.f32 %v2077, %v2203
        %v2238 = vadd.f32 %v2078, %v2205
        %v2239 = vadd.f32 %v2079, %v2207
        %v2240 = vpack.c.bf16 %v2225, %v2224
        %v2241 = vpack.c.bf16 %v2227, %v2226
        %v2242 = vpack.c.bf16 %v2229, %v2228
        %v2243 = vpack.c.bf16 %v2231, %v2230
        %v2244 = vpack.c.bf16 %v2233, %v2232
        %v2245 = vpack.c.bf16 %v2235, %v2234
        %v2246 = vpack.c.bf16 %v2237, %v2236
        %v2247 = vpack.c.bf16 %v2239, %v2238
        %s2248 = smul.u32 %s1854, 16
        %s2249 = smul.addr %s2248, 8
        %s2250 = scalar_lea.vmem [#allocation2], %s2249
        %v2251 = vld [vmem:[%s2250] sm:$0xff]
        %v2252 = vld [vmem:[%s2250 + $0x8] sm:$0xff]
        %v2253 = vld [vmem:[%s2250 + $0x10] sm:$0xff]
        %v2254 = vld [vmem:[%s2250 + $0x18] sm:$0xff]
        %v2255 = vld [vmem:[%s2250 + $0x20] sm:$0xff]
        %v2256 = vld [vmem:[%s2250 + $0x28] sm:$0xff]
        %v2257 = vld [vmem:[%s2250 + $0x30] sm:$0xff]
        %v2258 = vld [vmem:[%s2250 + $0x38] sm:$0xff]
        %v2259 = vld [vmem:[%s2250 + $0x40] sm:$0xff]
        %v2260 = vld [vmem:[%s2250 + $0x48] sm:$0xff]
        %v2261 = vld [vmem:[%s2250 + $0x50] sm:$0xff]
        %v2262 = vld [vmem:[%s2250 + $0x58] sm:$0xff]
        %v2263 = vld [vmem:[%s2250 + $0x60] sm:$0xff]
        %v2264 = vld [vmem:[%s2250 + $0x68] sm:$0xff]
        %v2265 = vld [vmem:[%s2250 + $0x70] sm:$0xff]
        %v2266 = vld [vmem:[%s2250 + $0x78] sm:$0xff]
        %s2267 = smul.addr %s2248, 8
        %s2268 = scalar_lea.vmem [#allocation3], %s2267
        %v2269 = vld [vmem:[%s2268] sm:$0xff]
        %v2270 = vld [vmem:[%s2268 + $0x8] sm:$0xff]
        %v2271 = vld [vmem:[%s2268 + $0x10] sm:$0xff]
        %v2272 = vld [vmem:[%s2268 + $0x18] sm:$0xff]
        %v2273 = vld [vmem:[%s2268 + $0x20] sm:$0xff]
        %v2274 = vld [vmem:[%s2268 + $0x28] sm:$0xff]
        %v2275 = vld [vmem:[%s2268 + $0x30] sm:$0xff]
        %v2276 = vld [vmem:[%s2268 + $0x38] sm:$0xff]
        %v2277 = vld [vmem:[%s2268 + $0x40] sm:$0xff]
        %v2278 = vld [vmem:[%s2268 + $0x48] sm:$0xff]
        %v2279 = vld [vmem:[%s2268 + $0x50] sm:$0xff]
        %v2280 = vld [vmem:[%s2268 + $0x58] sm:$0xff]
        %v2281 = vld [vmem:[%s2268 + $0x60] sm:$0xff]
        %v2282 = vld [vmem:[%s2268 + $0x68] sm:$0xff]
        %v2283 = vld [vmem:[%s2268 + $0x70] sm:$0xff]
        %v2284 = vld [vmem:[%s2268 + $0x78] sm:$0xff]
        %vm2285 = vcmask 130048
        %v2287 = vsel %vm2285, %v2240, 0
        %v2290 = vsel %vm2285, %v2241, 0
        %v2293 = vsel %vm2285, %v2242, 0
        %v2296 = vsel %vm2285, %v2243, 0
        %v2299 = vsel %vm2285, %v2244, 0
        %v2302 = vsel %vm2285, %v2245, 0
        %v2305 = vsel %vm2285, %v2246, 0
        %v2308 = vsel %vm2285, %v2247, 0
        %v2311 = vsel %vm2285, %v2251, 0
        %v2314 = vsel %vm2285, %v2252, 0
        %v2317 = vsel %vm2285, %v2253, 0
        %v2320 = vsel %vm2285, %v2254, 0
        %v2323 = vsel %vm2285, %v2255, 0
        %v2326 = vsel %vm2285, %v2256, 0
        %v2329 = vsel %vm2285, %v2257, 0
        %v2332 = vsel %vm2285, %v2258, 0
        %v2335 = vsel %vm2285, %v2259, 0
        %v2338 = vsel %vm2285, %v2260, 0
        %v2341 = vsel %vm2285, %v2261, 0
        %v2344 = vsel %vm2285, %v2262, 0
        %v2347 = vsel %vm2285, %v2263, 0
        %v2350 = vsel %vm2285, %v2264, 0
        %v2353 = vsel %vm2285, %v2265, 0
        %v2356 = vsel %vm2285, %v2266, 0
        %2358 = vmatprep.subr.bf16.mxu0 0
        %2359 = vmatpush1.bf16.xpose.msra.mxu0 %v2311
        %2360 = vmatprep.subr.bf16.mxu0 0
        %2361 = vmatpush1.bf16.xpose.msra.mxu0 %v2314
        %2362 = vmatprep.subr.bf16.mxu0 0
        %2363 = vmatpush1.bf16.xpose.msra.mxu0 %v2317
        %2364 = vmatprep.subr.bf16.mxu0 0
        %2365 = vmatpush1.bf16.xpose.msra.mxu0 %v2320
        %2366 = vmatprep.subr.bf16.mxu0 0
        %2367 = vmatpush1.bf16.xpose.msra.mxu0 %v2323
        %2368 = vmatprep.subr.bf16.mxu0 0
        %2369 = vmatpush1.bf16.xpose.msra.mxu0 %v2326
        %2370 = vmatprep.subr.bf16.mxu0 0
        %2371 = vmatpush1.bf16.xpose.msra.mxu0 %v2329
        %2372 = vmatprep.subr.bf16.mxu0 0
        %2373 = vmatpush1.bf16.xpose.msra.mxu0 %v2332
        %2374 = vmatprep.subr.bf16.mxu0 0
        %2375 = vmatpush1.bf16.xpose.msra.mxu0 %v2335
        %2376 = vmatprep.subr.bf16.mxu0 0
        %2377 = vmatpush1.bf16.xpose.msra.mxu0 %v2338
        %2378 = vmatprep.subr.bf16.mxu0 0
        %2379 = vmatpush1.bf16.xpose.msra.mxu0 %v2341
        %2380 = vmatprep.subr.bf16.mxu0 0
        %2381 = vmatpush1.bf16.xpose.msra.mxu0 %v2344
        %2382 = vmatprep.subr.bf16.mxu0 0
        %2383 = vmatpush1.bf16.xpose.msra.mxu0 %v2347
        %2384 = vmatprep.subr.bf16.mxu0 0
        %2385 = vmatpush1.bf16.xpose.msra.mxu0 %v2350
        %2386 = vmatprep.subr.bf16.mxu0 0
        %2387 = vmatpush1.bf16.xpose.msra.mxu0 %v2353
        %2388 = vmatprep.subr.bf16.mxu0 0
        %2389 = vmatpush1.bf16.xpose.msra.mxu0 %v2356
        %2390 = vmatprep.mubr.bf16.mxu0 0
        %2391 = vmatmul.mubr.bf16.gmra.mrb[0].mxu0 %v2287
        %v2392 = vpop.f32.mrb[0].mxu0
        %v2393 = vadd.f32 %v1851, %v2392
        %v2394 = vpop.f32.mrb[0].mxu0
        %v2395 = vadd.f32 %v1852, %v2394
        %v2396 = vpop.f32.mrb[0].mxu0
        %v2397 = vadd.f32 %v1851, %v2396
        %v2398 = vpop.f32.mrb[0].mxu0
        %v2399 = vadd.f32 %v1852, %v2398
        %2400 = vmatprep.mubr.bf16.mxu0 0
        %2401 = vmatmul.mubr.bf16.gmra.mrb[0].mxu0 %v2290
        %v2402 = vpop.f32.mrb[0].mxu0
        %v2403 = vadd.f32 %v1851, %v2402
        %v2404 = vpop.f32.mrb[0].mxu0
        %v2405 = vadd.f32 %v1852, %v2404
        %v2406 = vpop.f32.mrb[0].mxu0
        %v2407 = vadd.f32 %v1851, %v2406
        %v2408 = vpop.f32.mrb[0].mxu0
        %v2409 = vadd.f32 %v1852, %v2408
        %2410 = vmatprep.mubr.bf16.mxu0 0
        %2411 = vmatmul.mubr.bf16.gmra.mrb[0].mxu0 %v2293
        %v2412 = vpop.f32.mrb[0].mxu0
        %v2413 = vadd.f32 %v1851, %v2412
        %v2414 = vpop.f32.mrb[0].mxu0
        %v2415 = vadd.f32 %v1852, %v2414
        %v2416 = vpop.f32.mrb[0].mxu0
        %v2417 = vadd.f32 %v1851, %v2416
        %v2418 = vpop.f32.mrb[0].mxu0
        %v2419 = vadd.f32 %v1852, %v2418
        %2420 = vmatprep.mubr.bf16.mxu0 0
        %2421 = vmatmul.mubr.bf16.gmra.mrb[0].mxu0 %v2296
        %v2422 = vpop.f32.mrb[0].mxu0
        %v2423 = vadd.f32 %v1851, %v2422
        %v2424 = vpop.f32.mrb[0].mxu0
        %v2425 = vadd.f32 %v1852, %v2424
        %v2426 = vpop.f32.mrb[0].mxu0
        %v2427 = vadd.f32 %v1851, %v2426
        %v2428 = vpop.f32.mrb[0].mxu0
        %v2429 = vadd.f32 %v1852, %v2428
        %2430 = vmatprep.mubr.bf16.mxu0 0
        %2431 = vmatmul.mubr.bf16.gmra.mrb[0].mxu0 %v2299
        %v2432 = vpop.f32.mrb[0].mxu0
        %v2433 = vadd.f32 %v1851, %v2432
        %v2434 = vpop.f32.mrb[0].mxu0
        %v2435 = vadd.f32 %v1852, %v2434
        %v2436 = vpop.f32.mrb[0].mxu0
        %v2437 = vadd.f32 %v1851, %v2436
        %v2438 = vpop.f32.mrb[0].mxu0
        %v2439 = vadd.f32 %v1852, %v2438
        %2440 = vmatprep.mubr.bf16.mxu0 0
        %2441 = vmatmul.mubr.bf16.gmra.mrb[0].mxu0 %v2302
        %v2442 = vpop.f32.mrb[0].mxu0
        %v2443 = vadd.f32 %v1851, %v2442
        %v2444 = vpop.f32.mrb[0].mxu0
        %v2445 = vadd.f32 %v1852, %v2444
        %v2446 = vpop.f32.mrb[0].mxu0
        %v2447 = vadd.f32 %v1851, %v2446
        %v2448 = vpop.f32.mrb[0].mxu0
        %v2449 = vadd.f32 %v1852, %v2448
        %2450 = vmatprep.mubr.bf16.mxu0 0
        %2451 = vmatmul.mubr.bf16.gmra.mrb[0].mxu0 %v2305
        %v2452 = vpop.f32.mrb[0].mxu0
        %v2453 = vadd.f32 %v1851, %v2452
        %v2454 = vpop.f32.mrb[0].mxu0
        %v2455 = vadd.f32 %v1852, %v2454
        %v2456 = vpop.f32.mrb[0].mxu0
        %v2457 = vadd.f32 %v1851, %v2456
        %v2458 = vpop.f32.mrb[0].mxu0
        %v2459 = vadd.f32 %v1852, %v2458
        %2460 = vmatprep.mubr.bf16.mxu0 0
        %2461 = vmatmul.mubr.bf16.gmra.mrb[0].mxu0 %v2308
        %v2462 = vpop.f32.mrb[0].mxu0
        %v2463 = vadd.f32 %v1851, %v2462
        %v2464 = vpop.f32.mrb[0].mxu0
        %v2465 = vadd.f32 %v1852, %v2464
        %v2466 = vpop.f32.mrb[0].mxu0
        %v2467 = vadd.f32 %v1851, %v2466
        %v2468 = vpop.f32.mrb[0].mxu0
        %v2469 = vadd.f32 %v1852, %v2468
        %2470 = vdwg.mxu0
        %v2471 = vmax.f32 %v2393, %v2395
        %2472 = vmax.xlane.f32.xlu0 %v2471
        %v2473 = vpop.xlane.xlu0 %2472
        %v2474 = vmax.f32 %v2397, %v2399
        %2475 = vmax.xlane.f32.xlu0 %v2474
        %v2476 = vpop.xlane.xlu0 %2475
        %v2477 = vmax.f32 %v2403, %v2405
        %2478 = vmax.xlane.f32.xlu0 %v2477
        %v2479 = vpop.xlane.xlu0 %2478
        %v2480 = vmax.f32 %v2407, %v2409
        %2481 = vmax.xlane.f32.xlu0 %v2480
        %v2482 = vpop.xlane.xlu0 %2481
        %v2483 = vmax.f32 %v2413, %v2415
        %2484 = vmax.xlane.f32.xlu0 %v2483
        %v2485 = vpop.xlane.xlu0 %2484
        %v2486 = vmax.f32 %v2417, %v2419
        %2487 = vmax.xlane.f32.xlu0 %v2486
        %v2488 = vpop.xlane.xlu0 %2487
        %v2489 = vmax.f32 %v2423, %v2425
        %2490 = vmax.xlane.f32.xlu0 %v2489
        %v2491 = vpop.xlane.xlu0 %2490
        %v2492 = vmax.f32 %v2427, %v2429
        %2493 = vmax.xlane.f32.xlu0 %v2492
        %v2494 = vpop.xlane.xlu0 %2493
        %v2495 = vmax.f32 %v2433, %v2435
        %2496 = vmax.xlane.f32.xlu0 %v2495
        %v2497 = vpop.xlane.xlu0 %2496
        %v2498 = vmax.f32 %v2437, %v2439
        %2499 = vmax.xlane.f32.xlu0 %v2498
        %v2500 = vpop.xlane.xlu0 %2499
        %v2501 = vmax.f32 %v2443, %v2445
        %2502 = vmax.xlane.f32.xlu0 %v2501
        %v2503 = vpop.xlane.xlu0 %2502
        %v2504 = vmax.f32 %v2447, %v2449
        %2505 = vmax.xlane.f32.xlu0 %v2504
        %v2506 = vpop.xlane.xlu0 %2505
        %v2507 = vmax.f32 %v2453, %v2455
        %2508 = vmax.xlane.f32.xlu0 %v2507
        %v2509 = vpop.xlane.xlu0 %2508
        %v2510 = vmax.f32 %v2457, %v2459
        %2511 = vmax.xlane.f32.xlu0 %v2510
        %v2512 = vpop.xlane.xlu0 %2511
        %v2513 = vmax.f32 %v2463, %v2465
        %2514 = vmax.xlane.f32.xlu0 %v2513
        %v2515 = vpop.xlane.xlu0 %2514
        %v2516 = vmax.f32 %v2467, %v2469
        %2517 = vmax.xlane.f32.xlu0 %v2516
        %v2518 = vpop.xlane.xlu0 %2517
        %v2519 = vsub.f32 %v2393, %v2473
        %v2520 = vsub.f32 %v2395, %v2473
        %v2521 = vsub.f32 %v2397, %v2476
        %v2522 = vsub.f32 %v2399, %v2476
        %v2523 = vsub.f32 %v2403, %v2479
        %v2524 = vsub.f32 %v2405, %v2479
        %v2525 = vsub.f32 %v2407, %v2482
        %v2526 = vsub.f32 %v2409, %v2482
        %v2527 = vsub.f32 %v2413, %v2485
        %v2528 = vsub.f32 %v2415, %v2485
        %v2529 = vsub.f32 %v2417, %v2488
        %v2530 = vsub.f32 %v2419, %v2488
        %v2531 = vsub.f32 %v2423, %v2491
        %v2532 = vsub.f32 %v2425, %v2491
        %v2533 = vsub.f32 %v2427, %v2494
        %v2534 = vsub.f32 %v2429, %v2494
        %v2535 = vsub.f32 %v2433, %v2497
        %v2536 = vsub.f32 %v2435, %v2497
        %v2537 = vsub.f32 %v2437, %v2500
        %v2538 = vsub.f32 %v2439, %v2500
        %v2539 = vsub.f32 %v2443, %v2503
        %v2540 = vsub.f32 %v2445, %v2503
        %v2541 = vsub.f32 %v2447, %v2506
        %v2542 = vsub.f32 %v2449, %v2506
        %v2543 = vsub.f32 %v2453, %v2509
        %v2544 = vsub.f32 %v2455, %v2509
        %v2545 = vsub.f32 %v2457, %v2512
        %v2546 = vsub.f32 %v2459, %v2512
        %v2547 = vsub.f32 %v2463, %v2515
        %v2548 = vsub.f32 %v2465, %v2515
        %v2549 = vsub.f32 %v2467, %v2518
        %v2550 = vsub.f32 %v2469, %v2518
        %v2551 = vmul.f32 %v2519, 1.442695
        %v2552 = vpow.pop %v2551
        %v2553 = vmul.f32 %v2520, 1.442695
        %v2554 = vpow.pop %v2553
        %v2555 = vmul.f32 %v2521, 1.442695
        %v2556 = vpow.pop %v2555
        %v2557 = vmul.f32 %v2522, 1.442695
        %v2558 = vpow.pop %v2557
        %v2559 = vmul.f32 %v2523, 1.442695
        %v2560 = vpow.pop %v2559
        %v2561 = vmul.f32 %v2524, 1.442695
        %v2562 = vpow.pop %v2561
        %v2563 = vmul.f32 %v2525, 1.442695
        %v2564 = vpow.pop %v2563
        %v2565 = vmul.f32 %v2526, 1.442695
        %v2566 = vpow.pop %v2565
        %v2567 = vmul.f32 %v2527, 1.442695
        %v2568 = vpow.pop %v2567
        %v2569 = vmul.f32 %v2528, 1.442695
        %v2570 = vpow.pop %v2569
        %v2571 = vmul.f32 %v2529, 1.442695
        %v2572 = vpow.pop %v2571
        %v2573 = vmul.f32 %v2530, 1.442695
        %v2574 = vpow.pop %v2573
        %v2575 = vmul.f32 %v2531, 1.442695
        %v2576 = vpow.pop %v2575
        %v2577 = vmul.f32 %v2532, 1.442695
        %v2578 = vpow.pop %v2577
        %v2579 = vmul.f32 %v2533, 1.442695
        %v2580 = vpow.pop %v2579
        %v2581 = vmul.f32 %v2534, 1.442695
        %v2582 = vpow.pop %v2581
        %v2583 = vmul.f32 %v2535, 1.442695
        %v2584 = vpow.pop %v2583
        %v2585 = vmul.f32 %v2536, 1.442695
        %v2586 = vpow.pop %v2585
        %v2587 = vmul.f32 %v2537, 1.442695
        %v2588 = vpow.pop %v2587
        %v2589 = vmul.f32 %v2538, 1.442695
        %v2590 = vpow.pop %v2589
        %v2591 = vmul.f32 %v2539, 1.442695
        %v2592 = vpow.pop %v2591
        %v2593 = vmul.f32 %v2540, 1.442695
        %v2594 = vpow.pop %v2593
        %v2595 = vmul.f32 %v2541, 1.442695
        %v2596 = vpow.pop %v2595
        %v2597 = vmul.f32 %v2542, 1.442695
        %v2598 = vpow.pop %v2597
        %v2599 = vmul.f32 %v2543, 1.442695
        %v2600 = vpow.pop %v2599
        %v2601 = vmul.f32 %v2544, 1.442695
        %v2602 = vpow.pop %v2601
        %v2603 = vmul.f32 %v2545, 1.442695
        %v2604 = vpow.pop %v2603
        %v2605 = vmul.f32 %v2546, 1.442695
        %v2606 = vpow.pop %v2605
        %v2607 = vmul.f32 %v2547, 1.442695
        %v2608 = vpow.pop %v2607
        %v2609 = vmul.f32 %v2548, 1.442695
        %v2610 = vpow.pop %v2609
        %v2611 = vmul.f32 %v2549, 1.442695
        %v2612 = vpow.pop %v2611
        %v2613 = vmul.f32 %v2550, 1.442695
        %v2614 = vpow.pop %v2613
        %v2615 = vadd.f32 %v2552, %v2554
        %2616 = vadd.xlane.f32.xlu0 %v2615
        %v2617 = vpop.xlane.xlu0 %2616
        %v2618 = vadd.f32 %v2556, %v2558
        %2619 = vadd.xlane.f32.xlu0 %v2618
        %v2620 = vpop.xlane.xlu0 %2619
        %v2621 = vadd.f32 %v2560, %v2562
        %2622 = vadd.xlane.f32.xlu0 %v2621
        %v2623 = vpop.xlane.xlu0 %2622
        %v2624 = vadd.f32 %v2564, %v2566
        %2625 = vadd.xlane.f32.xlu0 %v2624
        %v2626 = vpop.xlane.xlu0 %2625
        %v2627 = vadd.f32 %v2568, %v2570
        %2628 = vadd.xlane.f32.xlu0 %v2627
        %v2629 = vpop.xlane.xlu0 %2628
        %v2630 = vadd.f32 %v2572, %v2574
        %2631 = vadd.xlane.f32.xlu0 %v2630
        %v2632 = vpop.xlane.xlu0 %2631
        %v2633 = vadd.f32 %v2576, %v2578
        %2634 = vadd.xlane.f32.xlu0 %v2633
        %v2635 = vpop.xlane.xlu0 %2634
        %v2636 = vadd.f32 %v2580, %v2582
        %2637 = vadd.xlane.f32.xlu0 %v2636
        %v2638 = vpop.xlane.xlu0 %2637
        %v2639 = vadd.f32 %v2584, %v2586
        %2640 = vadd.xlane.f32.xlu0 %v2639
        %v2641 = vpop.xlane.xlu0 %2640
        %v2642 = vadd.f32 %v2588, %v2590
        %2643 = vadd.xlane.f32.xlu0 %v2642
        %v2644 = vpop.xlane.xlu0 %2643
        %v2645 = vadd.f32 %v2592, %v2594
        %2646 = vadd.xlane.f32.xlu0 %v2645
        %v2647 = vpop.xlane.xlu0 %2646
        %v2648 = vadd.f32 %v2596, %v2598
        %2649 = vadd.xlane.f32.xlu0 %v2648
        %v2650 = vpop.xlane.xlu0 %2649
        %v2651 = vadd.f32 %v2600, %v2602
        %2652 = vadd.xlane.f32.xlu0 %v2651
        %v2653 = vpop.xlane.xlu0 %2652
        %v2654 = vadd.f32 %v2604, %v2606
        %2655 = vadd.xlane.f32.xlu0 %v2654
        %v2656 = vpop.xlane.xlu0 %2655
        %v2657 = vadd.f32 %v2608, %v2610
        %2658 = vadd.xlane.f32.xlu0 %v2657
        %v2659 = vpop.xlane.xlu0 %2658
        %v2660 = vadd.f32 %v2612, %v2614
        %2661 = vadd.xlane.f32.xlu0 %v2660
        %v2662 = vpop.xlane.xlu0 %2661
        %v2663 = vpack.c.bf16 %v2556, %v2552
        %v2664 = vpack.c.bf16 %v2558, %v2554
        %v2665 = vpack.c.bf16 %v2564, %v2560
        %v2666 = vpack.c.bf16 %v2566, %v2562
        %v2667 = vpack.c.bf16 %v2572, %v2568
        %v2668 = vpack.c.bf16 %v2574, %v2570
        %v2669 = vpack.c.bf16 %v2580, %v2576
        %v2670 = vpack.c.bf16 %v2582, %v2578
        %v2671 = vpack.c.bf16 %v2588, %v2584
        %v2672 = vpack.c.bf16 %v2590, %v2586
        %v2673 = vpack.c.bf16 %v2596, %v2592
        %v2674 = vpack.c.bf16 %v2598, %v2594
        %v2675 = vpack.c.bf16 %v2604, %v2600
        %v2676 = vpack.c.bf16 %v2606, %v2602
        %v2677 = vpack.c.bf16 %v2612, %v2608
        %v2678 = vpack.c.bf16 %v2614, %v2610
        %2679 = vmatprep.subr.bf16.mxu0 0
        %2680 = vmatpush1.bf16.msra.mxu0 %v2269
        %2681 = vmatprep.subr.bf16.mxu0 0
        %2682 = vmatpush1.bf16.msra.mxu0 %v2270
        %2683 = vmatprep.subr.bf16.mxu0 0
        %2684 = vmatpush1.bf16.msra.mxu0 %v2271
        %2685 = vmatprep.subr.bf16.mxu0 0
        %2686 = vmatpush1.bf16.msra.mxu0 %v2272
        %2687 = vmatprep.subr.bf16.mxu0 0
        %2688 = vmatpush1.bf16.msra.mxu0 %v2273
        %2689 = vmatprep.subr.bf16.mxu0 0
        %2690 = vmatpush1.bf16.msra.mxu0 %v2274
        %2691 = vmatprep.subr.bf16.mxu0 0
        %2692 = vmatpush1.bf16.msra.mxu0 %v2275
        %2693 = vmatprep.subr.bf16.mxu0 0
        %2694 = vmatpush1.bf16.msra.mxu0 %v2276
        %2695 = vmatprep.subr.bf16.mxu0 0
        %2696 = vmatpush1.bf16.msra.mxu0 %v2277
        %2697 = vmatprep.subr.bf16.mxu0 0
        %2698 = vmatpush1.bf16.msra.mxu0 %v2278
        %2699 = vmatprep.subr.bf16.mxu0 0
        %2700 = vmatpush1.bf16.msra.mxu0 %v2279
        %2701 = vmatprep.subr.bf16.mxu0 0
        %2702 = vmatpush1.bf16.msra.mxu0 %v2280
        %2703 = vmatprep.subr.bf16.mxu0 0
        %2704 = vmatpush1.bf16.msra.mxu0 %v2281
        %2705 = vmatprep.subr.bf16.mxu0 0
        %2706 = vmatpush1.bf16.msra.mxu0 %v2282
        %2707 = vmatprep.subr.bf16.mxu0 0
        %2708 = vmatpush1.bf16.msra.mxu0 %v2283
        %2709 = vmatprep.subr.bf16.mxu0 0
        %2710 = vmatpush1.bf16.msra.mxu0 %v2284
        %2711 = vmatprep.mubr.bf16.mxu0 %v2664
        %2712 = vmatmul.mubr.bf16.gmra.mrb[0].mxu0 %v2663
        %v2713 = vpop.f32.mrb[0].mxu0
        %v2714 = vadd.f32 0.0, %v2713
        %v2715 = vpop.f32.mrb[0].mxu0
        %v2716 = vpop.f32.mrb[0].mxu0
        %v2717 = vadd.f32 0.0, %v2716
        %v2718 = vpop.f32.mrb[0].mxu0
        %2719 = vmatprep.mubr.bf16.mxu0 %v2666
        %2720 = vmatmul.mubr.bf16.gmra.mrb[0].mxu0 %v2665
        %v2721 = vpop.f32.mrb[0].mxu0
        %v2722 = vadd.f32 0.0, %v2721
        %v2723 = vpop.f32.mrb[0].mxu0
        %v2724 = vpop.f32.mrb[0].mxu0
        %v2725 = vadd.f32 0.0, %v2724
        %v2726 = vpop.f32.mrb[0].mxu0
        %2727 = vmatprep.mubr.bf16.mxu0 %v2668
        %2728 = vmatmul.mubr.bf16.gmra.mrb[0].mxu0 %v2667
        %v2729 = vpop.f32.mrb[0].mxu0
        %v2730 = vadd.f32 0.0, %v2729
        %v2731 = vpop.f32.mrb[0].mxu0
        %v2732 = vpop.f32.mrb[0].mxu0
        %v2733 = vadd.f32 0.0, %v2732
        %v2734 = vpop.f32.mrb[0].mxu0
        %2735 = vmatprep.mubr.bf16.mxu0 %v2670
        %2736 = vmatmul.mubr.bf16.gmra.mrb[0].mxu0 %v2669
        %v2737 = vpop.f32.mrb[0].mxu0
        %v2738 = vadd.f32 0.0, %v2737
        %v2739 = vpop.f32.mrb[0].mxu0
        %v2740 = vpop.f32.mrb[0].mxu0
        %v2741 = vadd.f32 0.0, %v2740
        %v2742 = vpop.f32.mrb[0].mxu0
        %2743 = vmatprep.mubr.bf16.mxu0 %v2672
        %2744 = vmatmul.mubr.bf16.gmra.mrb[0].mxu0 %v2671
        %v2745 = vpop.f32.mrb[0].mxu0
        %v2746 = vadd.f32 0.0, %v2745
        %v2747 = vpop.f32.mrb[0].mxu0
        %v2748 = vpop.f32.mrb[0].mxu0
        %v2749 = vadd.f32 0.0, %v2748
        %v2750 = vpop.f32.mrb[0].mxu0
        %2751 = vmatprep.mubr.bf16.mxu0 %v2674
        %2752 = vmatmul.mubr.bf16.gmra.mrb[0].mxu0 %v2673
        %v2753 = vpop.f32.mrb[0].mxu0
        %v2754 = vadd.f32 0.0, %v2753
        %v2755 = vpop.f32.mrb[0].mxu0
        %v2756 = vpop.f32.mrb[0].mxu0
        %v2757 = vadd.f32 0.0, %v2756
        %v2758 = vpop.f32.mrb[0].mxu0
        %2759 = vmatprep.mubr.bf16.mxu0 %v2676
        %2760 = vmatmul.mubr.bf16.gmra.mrb[0].mxu0 %v2675
        %v2761 = vpop.f32.mrb[0].mxu0
        %v2762 = vadd.f32 0.0, %v2761
        %v2763 = vpop.f32.mrb[0].mxu0
        %v2764 = vpop.f32.mrb[0].mxu0
        %v2765 = vadd.f32 0.0, %v2764
        %v2766 = vpop.f32.mrb[0].mxu0
        %2767 = vmatprep.mubr.bf16.mxu0 %v2678
        %2768 = vmatmul.mubr.bf16.gmra.mrb[0].mxu0 %v2677
        %v2769 = vpop.f32.mrb[0].mxu0
        %v2770 = vadd.f32 0.0, %v2769
        %v2771 = vpop.f32.mrb[0].mxu0
        %v2772 = vpop.f32.mrb[0].mxu0
        %v2773 = vadd.f32 0.0, %v2772
        %v2774 = vpop.f32.mrb[0].mxu0
        %2775 = vdwg.mxu0
        %v2776 = vrcp.pop %v2617
        %v2777 = vrcp.pop %v2620
        %v2778 = vrcp.pop %v2623
        %v2779 = vrcp.pop %v2626
        %v2780 = vrcp.pop %v2629
        %v2781 = vrcp.pop %v2632
        %v2782 = vrcp.pop %v2635
        %v2783 = vrcp.pop %v2638
        %v2784 = vrcp.pop %v2641
        %v2785 = vrcp.pop %v2644
        %v2786 = vrcp.pop %v2647
        %v2787 = vrcp.pop %v2650
        %v2788 = vrcp.pop %v2653
        %v2789 = vrcp.pop %v2656
        %v2790 = vrcp.pop %v2659
        %v2791 = vrcp.pop %v2662
        %v2792 = vmul.f32 %v2714, %v2776
        %v2793 = vmul.f32 %v2717, %v2777
        %v2794 = vmul.f32 %v2722, %v2778
        %v2795 = vmul.f32 %v2725, %v2779
        %v2796 = vmul.f32 %v2730, %v2780
        %v2797 = vmul.f32 %v2733, %v2781
        %v2798 = vmul.f32 %v2738, %v2782
        %v2799 = vmul.f32 %v2741, %v2783
        %v2800 = vmul.f32 %v2746, %v2784
        %v2801 = vmul.f32 %v2749, %v2785
        %v2802 = vmul.f32 %v2754, %v2786
        %v2803 = vmul.f32 %v2757, %v2787
        %v2804 = vmul.f32 %v2762, %v2788
        %v2805 = vmul.f32 %v2765, %v2789
        %v2806 = vmul.f32 %v2770, %v2790
        %v2807 = vmul.f32 %v2773, %v2791
        %v2808 = vpack.c.bf16 %v2793, %v2792
        %v2809 = vpack.c.bf16 %v2795, %v2794
        %v2810 = vpack.c.bf16 %v2797, %v2796
        %v2811 = vpack.c.bf16 %v2799, %v2798
        %v2812 = vpack.c.bf16 %v2801, %v2800
        %v2813 = vpack.c.bf16 %v2803, %v2802
        %v2814 = vpack.c.bf16 %v2805, %v2804
        %v2815 = vpack.c.bf16 %v2807, %v2806
        %s2816 = smul.u32 %s1854, 2
        %s2817 = smul.addr %s2816, 4
        %s2818 = scalar_lea.vmem %s5, %s2817
        %v2819 = vld [vmem:[%s2818] sm:$0xf]
        %v2820 = vld [vmem:[%s2818 + $0x4] sm:$0xf]
        %v2823 = vunpack.c.l.b16 %v2819
        %v2824 = vunpack.c.l.b16 %v2820
        %v2825 = vpack.c.b16 %v2824, %v2823
        %v2828 = vsel %vm2285, %v2808, 0
        %v2831 = vsel %vm2285, %v2809, 0
        %v2834 = vsel %vm2285, %v2810, 0
        %v2837 = vsel %vm2285, %v2811, 0
        %v2840 = vsel %vm2285, %v2812, 0
        %v2843 = vsel %vm2285, %v2813, 0
        %v2846 = vsel %vm2285, %v2814, 0
        %v2849 = vsel %vm2285, %v2815, 0
        %2851 = vmatprep.subr.bf16.mxu0 0
        %2852 = vmatpush1.bf16.msra.mxu0 %v2825
        %2853 = vmatprep.subr.bf16.mxu0 0
        %2854 = vmatpush1.bf16.msra.mxu0 0
        %2855 = vmatprep.subr.bf16.mxu0 0
        %2856 = vmatpush1.bf16.msra.mxu0 0
        %2857 = vmatprep.subr.bf16.mxu0 0
        %2858 = vmatpush1.bf16.msra.mxu0 0
        %2859 = vmatprep.subr.bf16.mxu0 0
        %2860 = vmatpush1.bf16.msra.mxu0 0
        %2861 = vmatprep.subr.bf16.mxu0 0
        %2862 = vmatpush1.bf16.msra.mxu0 0
        %2863 = vmatprep.subr.bf16.mxu0 0
        %2864 = vmatpush1.bf16.msra.mxu0 0
        %2865 = vmatprep.subr.bf16.mxu0 0
        %2866 = vmatpush1.bf16.msra.mxu0 0
        %2867 = vmatprep.subr.bf16.mxu0 0
        %2868 = vmatpush1.bf16.msra.mxu0 0
        %2869 = vmatprep.subr.bf16.mxu0 0
        %2870 = vmatpush1.bf16.msra.mxu0 0
        %2871 = vmatprep.subr.bf16.mxu0 0
        %2872 = vmatpush1.bf16.msra.mxu0 0
        %2873 = vmatprep.subr.bf16.mxu0 0
        %2874 = vmatpush1.bf16.msra.mxu0 0
        %2875 = vmatprep.subr.bf16.mxu0 0
        %2876 = vmatpush1.bf16.msra.mxu0 0
        %2877 = vmatprep.subr.bf16.mxu0 0
        %2878 = vmatpush1.bf16.msra.mxu0 0
        %2879 = vmatprep.subr.bf16.mxu0 0
        %2880 = vmatpush1.bf16.msra.mxu0 0
        %2881 = vmatprep.subr.bf16.mxu0 0
        %2882 = vmatpush1.bf16.msra.mxu0 0
        %2883 = vmatprep.mubr.bf16.mxu0 0
        %2884 = vmatmul.mubr.bf16.gmra.mrb[0].mxu0 %v2828
        %v2885 = vpop.f32.mrb[0].mxu0
        %v2886 = vadd.f32 0.0, %v2885
        %v2887 = vpop.f32.mrb[0].mxu0
        %v2888 = vpop.f32.mrb[0].mxu0
        %v2889 = vadd.f32 0.0, %v2888
        %v2890 = vpop.f32.mrb[0].mxu0
        %2891 = vmatprep.mubr.bf16.mxu0 0
        %2892 = vmatmul.mubr.bf16.gmra.mrb[0].mxu0 %v2831
        %v2893 = vpop.f32.mrb[0].mxu0
        %v2894 = vadd.f32 0.0, %v2893
        %v2895 = vpop.f32.mrb[0].mxu0
        %v2896 = vpop.f32.mrb[0].mxu0
        %v2897 = vadd.f32 0.0, %v2896
        %v2898 = vpop.f32.mrb[0].mxu0
        %2899 = vmatprep.mubr.bf16.mxu0 0
        %2900 = vmatmul.mubr.bf16.gmra.mrb[0].mxu0 %v2834
        %v2901 = vpop.f32.mrb[0].mxu0
        %v2902 = vadd.f32 0.0, %v2901
        %v2903 = vpop.f32.mrb[0].mxu0
        %v2904 = vpop.f32.mrb[0].mxu0
        %v2905 = vadd.f32 0.0, %v2904
        %v2906 = vpop.f32.mrb[0].mxu0
        %2907 = vmatprep.mubr.bf16.mxu0 0
        %2908 = vmatmul.mubr.bf16.gmra.mrb[0].mxu0 %v2837
        %v2909 = vpop.f32.mrb[0].mxu0
        %v2910 = vadd.f32 0.0, %v2909
        %v2911 = vpop.f32.mrb[0].mxu0
        %v2912 = vpop.f32.mrb[0].mxu0
        %v2913 = vadd.f32 0.0, %v2912
        %v2914 = vpop.f32.mrb[0].mxu0
        %2915 = vmatprep.mubr.bf16.mxu0 0
        %2916 = vmatmul.mubr.bf16.gmra.mrb[0].mxu0 %v2840
        %v2917 = vpop.f32.mrb[0].mxu0
        %v2918 = vadd.f32 0.0, %v2917
        %v2919 = vpop.f32.mrb[0].mxu0
        %v2920 = vpop.f32.mrb[0].mxu0
        %v2921 = vadd.f32 0.0, %v2920
        %v2922 = vpop.f32.mrb[0].mxu0
        %2923 = vmatprep.mubr.bf16.mxu0 0
        %2924 = vmatmul.mubr.bf16.gmra.mrb[0].mxu0 %v2843
        %v2925 = vpop.f32.mrb[0].mxu0
        %v2926 = vadd.f32 0.0, %v2925
        %v2927 = vpop.f32.mrb[0].mxu0
        %v2928 = vpop.f32.mrb[0].mxu0
        %v2929 = vadd.f32 0.0, %v2928
        %v2930 = vpop.f32.mrb[0].mxu0
        %2931 = vmatprep.mubr.bf16.mxu0 0
        %2932 = vmatmul.mubr.bf16.gmra.mrb[0].mxu0 %v2846
        %v2933 = vpop.f32.mrb[0].mxu0
        %v2934 = vadd.f32 0.0, %v2933
        %v2935 = vpop.f32.mrb[0].mxu0
        %v2936 = vpop.f32.mrb[0].mxu0
        %v2937 = vadd.f32 0.0, %v2936
        %v2938 = vpop.f32.mrb[0].mxu0
        %2939 = vmatprep.mubr.bf16.mxu0 0
        %2940 = vmatmul.mubr.bf16.gmra.mrb[0].mxu0 %v2849
        %v2941 = vpop.f32.mrb[0].mxu0
        %v2942 = vadd.f32 0.0, %v2941
        %v2943 = vpop.f32.mrb[0].mxu0
        %v2944 = vpop.f32.mrb[0].mxu0
        %v2945 = vadd.f32 0.0, %v2944
        %v2946 = vpop.f32.mrb[0].mxu0
        %2947 = vdwg.mxu0
        %v2948 = vadd.f32 %v1859, %v2886
        %v2949 = vadd.f32 %v1860, %v2889
        %v2950 = vadd.f32 %v1861, %v2894
        %v2951 = vadd.f32 %v1862, %v2897
        %v2952 = vadd.f32 %v1863, %v2902
        %v2953 = vadd.f32 %v1864, %v2905
        %v2954 = vadd.f32 %v1865, %v2910
        %v2955 = vadd.f32 %v1866, %v2913
        %v2956 = vadd.f32 %v1867, %v2918
        %v2957 = vadd.f32 %v1868, %v2921
        %v2958 = vadd.f32 %v1869, %v2926
        %v2959 = vadd.f32 %v1870, %v2929
        %v2960 = vadd.f32 %v1871, %v2934
        %v2961 = vadd.f32 %v1872, %v2937
        %v2962 = vadd.f32 %v1873, %v2942
        %v2963 = vadd.f32 %v1874, %v2945
      $region65: #{attention_forward.1} parent=55 // loop_footer
        %s1858 = sadd.s32 1, %s1854
      $region66: #{attention_forward.1} parent=55 // loop_footer_branch
        %1853 = sbr.rel target = $region62
      $region67: #{attention_forward.1} parent=55 // loop_exit
        _
      %v2964 = vld [vmem:[%s6] sm:$0x1]
      %v2966 = vlaneseq
      %v2967 = vshrl.u32 %v2966, 7
      %v2968 = vsub.s32 0, %v2967
      %v2969 = vrot.slane %v2964, %v2968
      %v2971 = vadd.f32 %v1859, %v2969
      %v2972 = vadd.f32 %v1860, %v2969
      %v2973 = vadd.f32 %v1861, %v2969
      %v2974 = vadd.f32 %v1862, %v2969
      %v2975 = vadd.f32 %v1863, %v2969
      %v2976 = vadd.f32 %v1864, %v2969
      %v2977 = vadd.f32 %v1865, %v2969
      %v2978 = vadd.f32 %v1866, %v2969
      %v2979 = vadd.f32 %v1867, %v2969
      %v2980 = vadd.f32 %v1868, %v2969
      %v2981 = vadd.f32 %v1869, %v2969
      %v2982 = vadd.f32 %v1870, %v2969
      %v2983 = vadd.f32 %v1871, %v2969
      %v2984 = vadd.f32 %v1872, %v2969
      %v2985 = vadd.f32 %v1873, %v2969
      %v2986 = vadd.f32 %v1874, %v2969
      %vm2987 = vcmask 261120
      %2988 = vst.msk [vmem:[%s354] sm:$0xff] %vm2987, %v2971
      %2989 = vst.msk [vmem:[%s354 + $0x8] sm:$0xff] %vm2987, %v2972
      %2990 = vst.msk [vmem:[%s354 + $0x10] sm:$0xff] %vm2987, %v2973
      %2991 = vst.msk [vmem:[%s354 + $0x18] sm:$0xff] %vm2987, %v2974
      %2992 = vst.msk [vmem:[%s354 + $0x20] sm:$0xff] %vm2987, %v2975
      %2993 = vst.msk [vmem:[%s354 + $0x28] sm:$0xff] %vm2987, %v2976
      %2994 = vst.msk [vmem:[%s354 + $0x30] sm:$0xff] %vm2987, %v2977
      %2995 = vst.msk [vmem:[%s354 + $0x38] sm:$0xff] %vm2987, %v2978
      %2996 = vst.msk [vmem:[%s354 + $0x40] sm:$0xff] %vm2987, %v2979
      %2997 = vst.msk [vmem:[%s354 + $0x48] sm:$0xff] %vm2987, %v2980
      %2998 = vst.msk [vmem:[%s354 + $0x50] sm:$0xff] %vm2987, %v2981
      %2999 = vst.msk [vmem:[%s354 + $0x58] sm:$0xff] %vm2987, %v2982
      %3000 = vst.msk [vmem:[%s354 + $0x60] sm:$0xff] %vm2987, %v2983
      %3001 = vst.msk [vmem:[%s354 + $0x68] sm:$0xff] %vm2987, %v2984
      %3002 = vst.msk [vmem:[%s354 + $0x70] sm:$0xff] %vm2987, %v2985
      %3003 = vst.msk [vmem:[%s354 + $0x78] sm:$0xff] %vm2987, %v2986
      %s3004 = smul.u32 16, %s25
      %p3005 = scmp.lt.s32.totalorder %s24, 1
      %s3006 = scalar_select %p3005, %s24, 1
      %p3007 = scmp.lt.s32.totalorder %s3004, 31
      %s3008 = scalar_select %p3007, %s3004, 31
      %s3009 = smul.addr %s3006, 32
      %s3010 = sadd.s32 %s3008, %s3009
      %s3011 = smul.addr %s3010, 8
      %s3012 = scalar_lea.vmem %s9, %s3011
      // Predicated region
      $region68: #{attention_forward.1} parent=55 // pred_check
        %p3013 = pneg %p246
      $region69: #{attention_forward.1} parent=55 // pred_check_branch
        %3015 = sbr.rel (%p3013) target = $region71
      $region70: #{attention_forward.1} parent=55 // pred_region
        %s3016 = smul.u32 16, %s25
      $region71: #{attention_forward.1} parent=55 // pred_fallthru
        _
    $region56: #{attention_forward.1} parent=5 // pred_fallthru
      _
    %p3017 = scmp.le.s32.totalorder 2, %s15
    // Predicated region
    $region72: #{attention_forward.1} parent=5 // pred_check
      %p3018 = pneg %p3017
    $region73: #{attention_forward.1} parent=5 // pred_check_branch
      %3020 = sbr.rel (%p3018) target = $region75
    $region74: #{attention_forward.1} parent=5 // pred_region
      %s3021 = ssub.s32 %s15, 2
      // Predicated region
      $region76: #{attention_forward.1} parent=74 // pred_check
        %p3022 = pneg %p252
      $region77: #{attention_forward.1} parent=74 // pred_check_branch
        %3024 = sbr.rel (%p3022) target = $region79
      $region78: #{attention_forward.1} parent=74 // pred_region
        %s3025 = smul.u32 16, %s27
        %p3026 = scmp.lt.s32.totalorder %s26, 1
        %s3027 = scalar_select %p3026, %s26, 1
        %p3028 = scmp.lt.s32.totalorder %s3025, 31
        %s3029 = scalar_select %p3028, %s3025, 31
        %s3030 = smul.addr %s3027, 32
        %s3031 = sadd.s32 %s3029, %s3030
        %s3032 = smul.addr %s3031, 8
        %s3033 = scalar_lea.vmem %s9, %s3032
      $region79: #{attention_forward.1} parent=74 // pred_fallthru
        _
    $region75: #{attention_forward.1} parent=5 // pred_fallthru
      _
  $region6: #{attention_forward.1} parent=0 // loop_footer
    %s19 = sadd.s32 1, %s15
  $region7: #{attention_forward.1} parent=0 // loop_footer_branch
    %14 = sbr.rel target = $region3
  $region8: #{attention_forward.1} parent=0 // loop_exit
    _

</llo_original>
